<compile_context>
chip_gen: v7x
topology: tpu7x:2x2x1
jax: 0.10.0
libtpu: 0.0.40
codegen_flags: <defaults>
</compile_context>

<pallas_src>
import functools

import jax
import jax.numpy as jnp
from jax import lax
from jax.experimental import pallas as pl
from jax.experimental.pallas import tpu as pltpu

GROUPS = 4
EPS = 1e-5


def down_kernel(x_ref, temb_ref, w1_ref, w2_ref, gc_ref, m_ref, o_ref, *,
                w, hw, imgs):
    """One grid step = IMGS images packed along lanes; activations [C, imgs*hw]."""
    n = x_ref.shape[2]                       # imgs * hw  (lane width)
    cout = o_ref.shape[1]

    # Packed constants: columns [b1 g1 be1 b2 g2 be2 | G] of gc_ref.
    b1, g1, be1 = gc_ref[:, 0:1], gc_ref[:, 1:2], gc_ref[:, 2:3]
    b2, g2, be2 = gc_ref[:, 3:4], gc_ref[:, 4:5], gc_ref[:, 5:6]
    G = gc_ref[:, 6:6 + cout]                # [cout, cout] group-avg (carries 1/(hw*gs))

    # Hoist the 9 per-tap validity masks (reused by all three convs).
    tap_masks = [m_ref[i:i + 1, :] for i in range(9)]

    def conv3x3(a, wflat_ref, bias):
        # a: [ci, n]; 'same' 3x3 cross-correlation as ONE im2col matmul.
        # Taps are in-register lane rolls; masks zero every out-of-image read
        # (left/right columns, top/bottom rows, cross-image / circular wrap).
        taps = []
        for dy in range(3):
            for dx in range(3):
                s = (dy - 1) * w + (dx - 1)          # flat-lane source offset
                if s == 0:
                    taps.append(a)                   # center tap: no roll, no mask
                else:
                    t = pltpu.roll(a, (-s) % n, axis=1)
                    taps.append(t * tap_masks[3 * dy + dx])
        p = jnp.concatenate(taps, axis=0)            # [9*ci, n] vreg stacking
        return jnp.dot(wflat_ref[...], p,
                       preferred_element_type=jnp.float32) + bias   # [cout, n]

    def gn_silu(z, gamma, beta):
        # GroupNorm(GROUPS) + SiLU, computed per packed image (two-pass variance).
        # Spatial reduce commuted before the tiny [cout,cout]x[cout,1] matmul.
        means = []
        for i in range(imgs):
            s = jnp.sum(z[:, i * hw:(i + 1) * hw], axis=1, keepdims=True)
            means.append(jnp.broadcast_to(
                jnp.dot(G, s, preferred_element_type=jnp.float32), (cout, hw)))
        zc = z - jnp.concatenate(means, axis=1)
        rstds = []
        for i in range(imgs):
            zci = zc[:, i * hw:(i + 1) * hw]
            v = jnp.dot(G, jnp.sum(zci * zci, axis=1, keepdims=True),
                        preferred_element_type=jnp.float32)
            rstds.append(jnp.broadcast_to(lax.rsqrt(v + EPS), (cout, hw)))
        y = zc * jnp.concatenate(rstds, axis=1) * gamma + beta
        return y * jax.nn.sigmoid(y)                 # SiLU

    # DoubleConv.forward: conv1 once, then conv2 applied TWICE (shared weights).
    h1 = gn_silu(conv3x3(x_ref[0], w1_ref, b1), g1, be1)
    h2 = gn_silu(conv3x3(h1, w2_ref, b2), g2, be2)
    h3 = gn_silu(conv3x3(h2, w2_ref, b2), g2, be2)

    # + time embedding (precomputed + pre-broadcast in the wrapper): full-lane add.
    o_ref[0] = h3 + temb_ref[0]                      # [cout, n]


@jax.jit
def down_forward(x_nchw, t, params):
    B, Cin, H, W = x_nchw.shape
    h, w = H // 2, W // 2                    # AvgPool2d(2); assumes even H, W
    hw = h * w
    Cout = params["w1"].shape[0]             # w1 stored OHWI: [Cout, 3, 3, Cin]

    # Batch packing: IMGS images per grid step, concatenated along lanes.
    # Tiny batches -> one lane-dense step; larger even batches -> >=2 steps so
    # v7x's two TensorCores both get work under "parallel" semantics.
    if B % 2 == 0 and B * hw > 256:
        imgs = B // 2
    else:
        imgs = B
    steps = B // imgs
    n = imgs * hw

    x = x_nchw.astype(jnp.float32)
    # AvgPool2d(2) + flatten spatial (stays NCHW; one fused XLA op).
    xp = x.reshape(B, Cin, h, 2, w, 2).mean(axis=(3, 5)).reshape(B, Cin, hw)

    # Pad Cin up to a multiple of 8 so every im2col tap is a full-sublane vreg.
    cinp = ((Cin + 7) // 8) * 8
    xp = jnp.pad(xp, ((0, 0), (0, cinp - Cin), (0, 0)))
    # Pack imgs images along the lane axis: [steps, cinp, imgs*hw].
    xsteps = (xp.reshape(steps, imgs, cinp, hw)
                .transpose(0, 2, 1, 3).reshape(steps, cinp, n))

    # emb_layer: ReLU -> Linear in XLA, pre-broadcast to full lane width.
    temb = jnp.maximum(t.astype(jnp.float32), 0.0) @ params["wl"] + params["bl"]
    temb = temb.reshape(steps, imgs, Cout).transpose(0, 2, 1)       # [steps, Cout, imgs]
    temb = jnp.broadcast_to(temb[..., None],
                            (steps, Cout, imgs, hw)).reshape(steps, Cout, n)

    # Conv weights flattened for the channel-major im2col matmul (w1 Cin-padded,
    # so both convs share the same K=9*8 weight shape / MXU cadence).
    w1p = jnp.pad(params["w1"].astype(jnp.float32),
                  ((0, 0), (0, 0), (0, 0), (0, cinp - Cin)))
    w1c = w1p.reshape(Cout, 9 * cinp)
    w2c = params["w2"].astype(jnp.float32).reshape(Cout, 9 * Cout)

    # Per-channel vectors + GroupNorm averaging matrix packed in ONE block.
    gs = Cout // GROUPS
    ch = jnp.arange(Cout)
    G = jnp.where((ch[:, None] // gs) == (ch[None, :] // gs),
                  1.0 / (hw * gs), 0.0).astype(jnp.float32)         # [Cout, Cout]
    vecs = jnp.stack([params["b1"], params["g1"], params["be1"],
                      params["b2"], params["g2"], params["be2"]],
                     axis=1).astype(jnp.float32)                    # [Cout, 6]
    gconsts = jnp.concatenate([vecs, G], axis=1)                    # [Cout, 6 + Cout]

    # Validity masks per 3x3 tap: zero left/right column, top/bottom row and
    # (because images share the lane axis) any cross-image / circular wrap.
    pix = jnp.arange(n)
    xi = pix % w
    yi = (pix % hw) // w
    rows = []
    for dy in range(3):
        for dx in range(3):
            m = jnp.ones((n,), jnp.float32)
            if dx == 0:
                m = m * (xi != 0)
            if dx == 2:
                m = m * (xi != w - 1)
            if dy == 0:
                m = m * (yi != 0)
            if dy == 2:
                m = m * (yi != h - 1)
            rows.append(m)
    tap_masks = jnp.stack(rows).astype(jnp.float32)                 # [9, n]

    grid_spec = pltpu.PrefetchScalarGridSpec(
        num_scalar_prefetch=0,
        grid=(steps,),
        in_specs=[
            pl.BlockSpec((1, cinp, n), lambda s: (s, 0, 0)),
            pl.BlockSpec((1, Cout, n), lambda s: (s, 0, 0)),
            pl.BlockSpec((Cout, 9 * cinp), lambda s: (0, 0)),
            pl.BlockSpec((Cout, 9 * Cout), lambda s: (0, 0)),
            pl.BlockSpec((Cout, 6 + Cout), lambda s: (0, 0)),
            pl.BlockSpec((9, n), lambda s: (0, 0)),
        ],
        out_specs=pl.BlockSpec((1, Cout, n), lambda s: (s, 0, 0)),
    )

    out = pl.pallas_call(
        functools.partial(down_kernel, w=w, hw=hw, imgs=imgs),
        out_shape=jax.ShapeDtypeStruct((steps, Cout, n), jnp.float32),
        grid_spec=grid_spec,
        compiler_params=pltpu.CompilerParams(
            dimension_semantics=("parallel",)),
    )(xsteps, temb, w1c, w2c, gconsts, tap_masks)

    # Unpack lanes back to NCHW (tiny layout plumbing in XLA).
    return (out.reshape(steps, Cout, imgs, h, w)
               .transpose(0, 2, 1, 3, 4).reshape(B, Cout, h, w))


def down_reference(x_nchw, t, p):
    """Pure-JAX reference mirroring the PyTorch module (for validation)."""
    xn = jnp.transpose(x_nchw, (0, 2, 3, 1))
    B, H, W, C = xn.shape
    xp = xn.reshape(B, H // 2, 2, W // 2, 2, C).mean(axis=(2, 4))

    def conv(z, w_ohwi, b):
        w_hwio = jnp.transpose(w_ohwi, (1, 2, 3, 0))
        y = lax.conv_general_dilated(z, w_hwio, (1, 1), "SAME",
                                     dimension_numbers=("NHWC", "HWIO", "NHWC"),
                                     precision=lax.Precision.HIGHEST)
        return y + b.reshape(1, 1, 1, -1)

    def gn_silu(z, g, be):
        b_, hh, ww, c = z.shape
        zg = z.reshape(b_, hh, ww, GROUPS, c // GROUPS)
        m = zg.mean(axis=(1, 2, 4), keepdims=True)
        v = ((zg - m) ** 2).mean(axis=(1, 2, 4), keepdims=True)
        zn = ((zg - m) * lax.rsqrt(v + EPS)).reshape(b_, hh, ww, c)
        y = zn * g.reshape(1, 1, 1, -1) + be.reshape(1, 1, 1, -1)
        return y * jax.nn.sigmoid(y)

    h1 = gn_silu(conv(xp, p["w1"], p["b1"]), p["g1"], p["be1"])
    h2 = gn_silu(conv(h1, p["w2"], p["b2"]), p["g2"], p["be2"])
    h3 = gn_silu(conv(h2, p["w2"], p["b2"]), p["g2"], p["be2"])
    temb = jnp.maximum(t, 0.0) @ p["wl"] + p["bl"].reshape(1, -1)
    out = h3 + temb[:, None, None, :]
    return jnp.transpose(out, (0, 3, 1, 2))


if __name__ == "__main__":
    B, in_c, out_c, H, W, emb_dim = 2, 4, 8, 16, 16, 64
    key = jax.random.PRNGKey(0)
    ks = jax.random.split(key, 8)
    params = {
        # Conv weights stored OHWI (= torch OIHW permuted (0, 2, 3, 1));
        # GN affine = (ones, zeros) as in torch init.
        "w1": jax.random.normal(ks[0], (out_c, 3, 3, in_c), jnp.float32) * 0.1,
        "b1": jax.random.normal(ks[1], (out_c,), jnp.float32) * 0.1,
        "g1": jnp.ones((out_c,), jnp.float32),
        "be1": jnp.zeros((out_c,), jnp.float32),
        "w2": jax.random.normal(ks[2], (out_c, 3, 3, out_c), jnp.float32) * 0.1,
        "b2": jax.random.normal(ks[3], (out_c,), jnp.float32) * 0.1,
        "g2": jnp.ones((out_c,), jnp.float32),
        "be2": jnp.zeros((out_c,), jnp.float32),
        # Linear weight stored as [emb_dim, out_c] (torch [out_c, emb_dim].T).
        "wl": jax.random.normal(ks[4], (emb_dim, out_c), jnp.float32) * 0.1,
        "bl": jax.random.normal(ks[5], (out_c,), jnp.float32) * 0.1,
    }
    x = jax.random.normal(ks[6], (B, in_c, H, W), jnp.float32)
    t = jax.random.normal(ks[7], (B, emb_dim), jnp.float32)

    out = jax.block_until_ready(down_forward(x, t, params))
    assert out.shape == (B, out_c, H // 2, W // 2), out.shape

    ref = down_reference(x, t, params)
    err = float(jnp.max(jnp.abs(out - ref)))
    assert err < 5e-3, f"max abs err {err}"
    print("KERNEL_OK")
</pallas_src>

<mosaic_0001>
module attributes {stable_mosaic.version = 11 : i64} {
  func.func @down_kernel(%arg0: i32, %arg1: memref<1x8x128xf32, #tpu.memory_space<vmem>>, %arg2: memref<1x8x128xf32, #tpu.memory_space<vmem>>, %arg3: memref<8x72xf32, #tpu.memory_space<vmem>>, %arg4: memref<8x72xf32, #tpu.memory_space<vmem>>, %arg5: memref<8x14xf32, #tpu.memory_space<vmem>>, %arg6: memref<9x128xf32, #tpu.memory_space<vmem>>, %arg7: memref<1x8x128xf32, #tpu.memory_space<vmem>>) attributes {dimension_semantics = [#tpu.dimension_semantics<parallel>], iteration_bounds = array<i64: 1>, scalar_prefetch = 0 : i64, scratch_operands = 0 : i64, tpu.core_type = #tpu.core_type<tc>, window_params = [{transform_indices = @transform_0, window_bounds = array<i64: 1, 8, 128>}, {transform_indices = @transform_1, window_bounds = array<i64: 1, 8, 128>}, {pipeline_mode = #tpu.pipeline_mode<synchronous>, transform_indices = @transform_2, window_bounds = array<i64: 8, 72>}, {pipeline_mode = #tpu.pipeline_mode<synchronous>, transform_indices = @transform_3, window_bounds = array<i64: 8, 72>}, {pipeline_mode = #tpu.pipeline_mode<synchronous>, transform_indices = @transform_4, window_bounds = array<i64: 8, 14>}, {pipeline_mode = #tpu.pipeline_mode<synchronous>, transform_indices = @transform_5, window_bounds = array<i64: 9, 128>}, {transform_indices = @transform_6, window_bounds = array<i64: 1, 8, 128>}]} {
    %c0 = arith.constant 0 : index
    %c0_0 = arith.constant 0 : index
    %0 = vector.load %arg5[%c0, %c0_0] : memref<8x14xf32, #tpu.memory_space<vmem>>, vector<8x1xf32>
    %c0_1 = arith.constant 0 : index
    %c1 = arith.constant 1 : index
    %1 = vector.load %arg5[%c0_1, %c1] : memref<8x14xf32, #tpu.memory_space<vmem>>, vector<8x1xf32>
    %c0_2 = arith.constant 0 : index
    %c2 = arith.constant 2 : index
    %2 = vector.load %arg5[%c0_2, %c2] : memref<8x14xf32, #tpu.memory_space<vmem>>, vector<8x1xf32>
    %c0_3 = arith.constant 0 : index
    %c3 = arith.constant 3 : index
    %3 = vector.load %arg5[%c0_3, %c3] : memref<8x14xf32, #tpu.memory_space<vmem>>, vector<8x1xf32>
    %c0_4 = arith.constant 0 : index
    %c4 = arith.constant 4 : index
    %4 = vector.load %arg5[%c0_4, %c4] : memref<8x14xf32, #tpu.memory_space<vmem>>, vector<8x1xf32>
    %c0_5 = arith.constant 0 : index
    %c5 = arith.constant 5 : index
    %5 = vector.load %arg5[%c0_5, %c5] : memref<8x14xf32, #tpu.memory_space<vmem>>, vector<8x1xf32>
    %c0_6 = arith.constant 0 : index
    %c6 = arith.constant 6 : index
    %6 = vector.load %arg5[%c0_6, %c6] : memref<8x14xf32, #tpu.memory_space<vmem>>, vector<8x8xf32>
    %c0_7 = arith.constant 0 : index
    %c0_8 = arith.constant 0 : index
    %7 = vector.load %arg6[%c0_7, %c0_8] : memref<9x128xf32, #tpu.memory_space<vmem>>, vector<1x128xf32>
    %c1_9 = arith.constant 1 : index
    %c0_10 = arith.constant 0 : index
    %8 = vector.load %arg6[%c1_9, %c0_10] : memref<9x128xf32, #tpu.memory_space<vmem>>, vector<1x128xf32>
    %c2_11 = arith.constant 2 : index
    %c0_12 = arith.constant 0 : index
    %9 = vector.load %arg6[%c2_11, %c0_12] : memref<9x128xf32, #tpu.memory_space<vmem>>, vector<1x128xf32>
    %c3_13 = arith.constant 3 : index
    %c0_14 = arith.constant 0 : index
    %10 = vector.load %arg6[%c3_13, %c0_14] : memref<9x128xf32, #tpu.memory_space<vmem>>, vector<1x128xf32>
    %c5_15 = arith.constant 5 : index
    %c0_16 = arith.constant 0 : index
    %11 = vector.load %arg6[%c5_15, %c0_16] : memref<9x128xf32, #tpu.memory_space<vmem>>, vector<1x128xf32>
    %c6_17 = arith.constant 6 : index
    %c0_18 = arith.constant 0 : index
    %12 = vector.load %arg6[%c6_17, %c0_18] : memref<9x128xf32, #tpu.memory_space<vmem>>, vector<1x128xf32>
    %c7 = arith.constant 7 : index
    %c0_19 = arith.constant 0 : index
    %13 = vector.load %arg6[%c7, %c0_19] : memref<9x128xf32, #tpu.memory_space<vmem>>, vector<1x128xf32>
    %c8 = arith.constant 8 : index
    %c0_20 = arith.constant 0 : index
    %14 = vector.load %arg6[%c8, %c0_20] : memref<9x128xf32, #tpu.memory_space<vmem>>, vector<1x128xf32>
    %c0_21 = arith.constant 0 : index
    %c0_22 = arith.constant 0 : index
    %c0_23 = arith.constant 0 : index
    %15 = vector.load %arg1[%c0_21, %c0_22, %c0_23] : memref<1x8x128xf32, #tpu.memory_space<vmem>>, vector<1x8x128xf32>
    %16 = vector.shape_cast %15 : vector<1x8x128xf32> to vector<8x128xf32>
    %c9_i32 = arith.constant 9 : i32
    %17 = tpu.dynamic_rotate %16 by %c9_i32 dim 1 : vector<8x128xf32>, i32 -> vector<8x128xf32>
    %18 = vector.broadcast %7 : vector<1x128xf32> to vector<8x128xf32>
    %19 = arith.mulf %17, %18 : vector<8x128xf32>
    %c8_i32 = arith.constant 8 : i32
    %20 = tpu.dynamic_rotate %16 by %c8_i32 dim 1 : vector<8x128xf32>, i32 -> vector<8x128xf32>
    %21 = vector.broadcast %8 : vector<1x128xf32> to vector<8x128xf32>
    %22 = arith.mulf %20, %21 : vector<8x128xf32>
    %c7_i32 = arith.constant 7 : i32
    %23 = tpu.dynamic_rotate %16 by %c7_i32 dim 1 : vector<8x128xf32>, i32 -> vector<8x128xf32>
    %24 = vector.broadcast %9 : vector<1x128xf32> to vector<8x128xf32>
    %25 = arith.mulf %23, %24 : vector<8x128xf32>
    %c1_i32 = arith.constant 1 : i32
    %26 = tpu.dynamic_rotate %16 by %c1_i32 dim 1 : vector<8x128xf32>, i32 -> vector<8x128xf32>
    %27 = vector.broadcast %10 : vector<1x128xf32> to vector<8x128xf32>
    %28 = arith.mulf %26, %27 : vector<8x128xf32>
    %c127_i32 = arith.constant 127 : i32
    %29 = tpu.dynamic_rotate %16 by %c127_i32 dim 1 : vector<8x128xf32>, i32 -> vector<8x128xf32>
    %30 = vector.broadcast %11 : vector<1x128xf32> to vector<8x128xf32>
    %31 = arith.mulf %29, %30 : vector<8x128xf32>
    %c121_i32 = arith.constant 121 : i32
    %32 = tpu.dynamic_rotate %16 by %c121_i32 dim 1 : vector<8x128xf32>, i32 -> vector<8x128xf32>
    %33 = vector.broadcast %12 : vector<1x128xf32> to vector<8x128xf32>
    %34 = arith.mulf %32, %33 : vector<8x128xf32>
    %c120_i32 = arith.constant 120 : i32
    %35 = tpu.dynamic_rotate %16 by %c120_i32 dim 1 : vector<8x128xf32>, i32 -> vector<8x128xf32>
    %36 = vector.broadcast %13 : vector<1x128xf32> to vector<8x128xf32>
    %37 = arith.mulf %35, %36 : vector<8x128xf32>
    %c119_i32 = arith.constant 119 : i32
    %38 = tpu.dynamic_rotate %16 by %c119_i32 dim 1 : vector<8x128xf32>, i32 -> vector<8x128xf32>
    %39 = vector.broadcast %14 : vector<1x128xf32> to vector<8x128xf32>
    %40 = arith.mulf %38, %39 : vector<8x128xf32>
    %41 = tpu.concatenate %19, %22, %25, %28, %16, %31, %34, %37, %40 in 0 : vector<8x128xf32>, vector<8x128xf32>, vector<8x128xf32>, vector<8x128xf32>, vector<8x128xf32>, vector<8x128xf32>, vector<8x128xf32>, vector<8x128xf32>, vector<8x128xf32> -> vector<72x128xf32>
    %c0_24 = arith.constant 0 : index
    %c0_25 = arith.constant 0 : index
    %42 = vector.load %arg3[%c0_24, %c0_25] : memref<8x72xf32, #tpu.memory_space<vmem>>, vector<8x72xf32>
    %cst = arith.constant dense<0.000000e+00> : vector<8x128xf32>
    %43 = tpu.matmul %42, %41, %cst {dimension_numbers = #tpu.dot_dimension_numbers<[1], [0], [0], [1], [0, 0, 1, 1], [], []>} : vector<8x72xf32>, vector<72x128xf32>, vector<8x128xf32> -> vector<8x128xf32>
    %44 = vector.broadcast %0 : vector<8x1xf32> to vector<8x128xf32>
    %45 = arith.addf %43, %44 : vector<8x128xf32>
    %46 = vector.extract_strided_slice %45 {offsets = [0, 0], sizes = [8, 64], strides = [1, 1]} : vector<8x128xf32> to vector<8x64xf32>
    %cst_26 = arith.constant dense<0.000000e+00> : vector<8xf32>
    %47 = vector.multi_reduction <add>, %46, %cst_26 [1] : vector<8x64xf32> to vector<8xf32>
    %48 = vector.shape_cast %47 : vector<8xf32> to vector<8x1xf32>
    %cst_27 = arith.constant dense<0.000000e+00> : vector<8x1xf32>
    %49 = tpu.matmul %6, %48, %cst_27 {dimension_numbers = #tpu.dot_dimension_numbers<[1], [0], [0], [1], [0, 0, 1, 1], [], []>} : vector<8x8xf32>, vector<8x1xf32>, vector<8x1xf32> -> vector<8x1xf32>
    %50 = vector.shape_cast %49 : vector<8x1xf32> to vector<8x1xf32>
    %51 = vector.broadcast %50 : vector<8x1xf32> to vector<8x64xf32>
    %52 = vector.extract_strided_slice %45 {offsets = [0, 64], sizes = [8, 64], strides = [1, 1]} : vector<8x128xf32> to vector<8x64xf32>
    %cst_28 = arith.constant dense<0.000000e+00> : vector<8xf32>
    %53 = vector.multi_reduction <add>, %52, %cst_28 [1] : vector<8x64xf32> to vector<8xf32>
    %54 = vector.shape_cast %53 : vector<8xf32> to vector<8x1xf32>
    %cst_29 = arith.constant dense<0.000000e+00> : vector<8x1xf32>
    %55 = tpu.matmul %6, %54, %cst_29 {dimension_numbers = #tpu.dot_dimension_numbers<[1], [0], [0], [1], [0, 0, 1, 1], [], []>} : vector<8x8xf32>, vector<8x1xf32>, vector<8x1xf32> -> vector<8x1xf32>
    %56 = vector.shape_cast %55 : vector<8x1xf32> to vector<8x1xf32>
    %57 = vector.broadcast %56 : vector<8x1xf32> to vector<8x64xf32>
    %58 = tpu.concatenate %51, %57 in 1 : vector<8x64xf32>, vector<8x64xf32> -> vector<8x128xf32>
    %59 = arith.subf %45, %58 : vector<8x128xf32>
    %60 = vector.extract_strided_slice %59 {offsets = [0, 0], sizes = [8, 64], strides = [1, 1]} : vector<8x128xf32> to vector<8x64xf32>
    %61 = arith.mulf %60, %60 : vector<8x64xf32>
    %cst_30 = arith.constant dense<0.000000e+00> : vector<8xf32>
    %62 = vector.multi_reduction <add>, %61, %cst_30 [1] : vector<8x64xf32> to vector<8xf32>
    %63 = vector.shape_cast %62 : vector<8xf32> to vector<8x1xf32>
    %cst_31 = arith.constant dense<0.000000e+00> : vector<8x1xf32>
    %64 = tpu.matmul %6, %63, %cst_31 {dimension_numbers = #tpu.dot_dimension_numbers<[1], [0], [0], [1], [0, 0, 1, 1], [], []>} : vector<8x8xf32>, vector<8x1xf32>, vector<8x1xf32> -> vector<8x1xf32>
    %cst_32 = arith.constant 9.99999974E-6 : f32
    %65 = vector.broadcast %cst_32 : f32 to vector<8x1xf32>
    %66 = arith.addf %64, %65 : vector<8x1xf32>
    %67 = math.rsqrt %66 : vector<8x1xf32>
    %68 = vector.shape_cast %67 : vector<8x1xf32> to vector<8x1xf32>
    %69 = vector.broadcast %68 : vector<8x1xf32> to vector<8x64xf32>
    %70 = vector.extract_strided_slice %59 {offsets = [0, 64], sizes = [8, 64], strides = [1, 1]} : vector<8x128xf32> to vector<8x64xf32>
    %71 = arith.mulf %70, %70 : vector<8x64xf32>
    %cst_33 = arith.constant dense<0.000000e+00> : vector<8xf32>
    %72 = vector.multi_reduction <add>, %71, %cst_33 [1] : vector<8x64xf32> to vector<8xf32>
    %73 = vector.shape_cast %72 : vector<8xf32> to vector<8x1xf32>
    %cst_34 = arith.constant dense<0.000000e+00> : vector<8x1xf32>
    %74 = tpu.matmul %6, %73, %cst_34 {dimension_numbers = #tpu.dot_dimension_numbers<[1], [0], [0], [1], [0, 0, 1, 1], [], []>} : vector<8x8xf32>, vector<8x1xf32>, vector<8x1xf32> -> vector<8x1xf32>
    %cst_35 = arith.constant 9.99999974E-6 : f32
    %75 = vector.broadcast %cst_35 : f32 to vector<8x1xf32>
    %76 = arith.addf %74, %75 : vector<8x1xf32>
    %77 = math.rsqrt %76 : vector<8x1xf32>
    %78 = vector.shape_cast %77 : vector<8x1xf32> to vector<8x1xf32>
    %79 = vector.broadcast %78 : vector<8x1xf32> to vector<8x64xf32>
    %80 = tpu.concatenate %69, %79 in 1 : vector<8x64xf32>, vector<8x64xf32> -> vector<8x128xf32>
    %81 = arith.mulf %59, %80 : vector<8x128xf32>
    %82 = vector.broadcast %1 : vector<8x1xf32> to vector<8x128xf32>
    %83 = arith.mulf %81, %82 : vector<8x128xf32>
    %84 = vector.broadcast %2 : vector<8x1xf32> to vector<8x128xf32>
    %85 = arith.addf %83, %84 : vector<8x128xf32>
    %86 = arith.negf %85 : vector<8x128xf32>
    %87 = math.exp %86 : vector<8x128xf32>
    %cst_36 = arith.constant 1.000000e+00 : f32
    %88 = vector.broadcast %cst_36 : f32 to vector<8x128xf32>
    %89 = arith.addf %88, %87 : vector<8x128xf32>
    %90 = arith.divf %88, %89 : vector<8x128xf32>
    %91 = arith.mulf %85, %90 : vector<8x128xf32>
    %c9_i32_37 = arith.constant 9 : i32
    %92 = tpu.dynamic_rotate %91 by %c9_i32_37 dim 1 : vector<8x128xf32>, i32 -> vector<8x128xf32>
    %93 = vector.broadcast %7 : vector<1x128xf32> to vector<8x128xf32>
    %94 = arith.mulf %92, %93 : vector<8x128xf32>
    %c8_i32_38 = arith.constant 8 : i32
    %95 = tpu.dynamic_rotate %91 by %c8_i32_38 dim 1 : vector<8x128xf32>, i32 -> vector<8x128xf32>
    %96 = vector.broadcast %8 : vector<1x128xf32> to vector<8x128xf32>
    %97 = arith.mulf %95, %96 : vector<8x128xf32>
    %c7_i32_39 = arith.constant 7 : i32
    %98 = tpu.dynamic_rotate %91 by %c7_i32_39 dim 1 : vector<8x128xf32>, i32 -> vector<8x128xf32>
    %99 = vector.broadcast %9 : vector<1x128xf32> to vector<8x128xf32>
    %100 = arith.mulf %98, %99 : vector<8x128xf32>
    %c1_i32_40 = arith.constant 1 : i32
    %101 = tpu.dynamic_rotate %91 by %c1_i32_40 dim 1 : vector<8x128xf32>, i32 -> vector<8x128xf32>
    %102 = vector.broadcast %10 : vector<1x128xf32> to vector<8x128xf32>
    %103 = arith.mulf %101, %102 : vector<8x128xf32>
    %c127_i32_41 = arith.constant 127 : i32
    %104 = tpu.dynamic_rotate %91 by %c127_i32_41 dim 1 : vector<8x128xf32>, i32 -> vector<8x128xf32>
    %105 = vector.broadcast %11 : vector<1x128xf32> to vector<8x128xf32>
    %106 = arith.mulf %104, %105 : vector<8x128xf32>
    %c121_i32_42 = arith.constant 121 : i32
    %107 = tpu.dynamic_rotate %91 by %c121_i32_42 dim 1 : vector<8x128xf32>, i32 -> vector<8x128xf32>
    %108 = vector.broadcast %12 : vector<1x128xf32> to vector<8x128xf32>
    %109 = arith.mulf %107, %108 : vector<8x128xf32>
    %c120_i32_43 = arith.constant 120 : i32
    %110 = tpu.dynamic_rotate %91 by %c120_i32_43 dim 1 : vector<8x128xf32>, i32 -> vector<8x128xf32>
    %111 = vector.broadcast %13 : vector<1x128xf32> to vector<8x128xf32>
    %112 = arith.mulf %110, %111 : vector<8x128xf32>
    %c119_i32_44 = arith.constant 119 : i32
    %113 = tpu.dynamic_rotate %91 by %c119_i32_44 dim 1 : vector<8x128xf32>, i32 -> vector<8x128xf32>
    %114 = vector.broadcast %14 : vector<1x128xf32> to vector<8x128xf32>
    %115 = arith.mulf %113, %114 : vector<8x128xf32>
    %116 = tpu.concatenate %94, %97, %100, %103, %91, %106, %109, %112, %115 in 0 : vector<8x128xf32>, vector<8x128xf32>, vector<8x128xf32>, vector<8x128xf32>, vector<8x128xf32>, vector<8x128xf32>, vector<8x128xf32>, vector<8x128xf32>, vector<8x128xf32> -> vector<72x128xf32>
    %c0_45 = arith.constant 0 : index
    %c0_46 = arith.constant 0 : index
    %117 = vector.load %arg4[%c0_45, %c0_46] : memref<8x72xf32, #tpu.memory_space<vmem>>, vector<8x72xf32>
    %cst_47 = arith.constant dense<0.000000e+00> : vector<8x128xf32>
    %118 = tpu.matmul %117, %116, %cst_47 {dimension_numbers = #tpu.dot_dimension_numbers<[1], [0], [0], [1], [0, 0, 1, 1], [], []>} : vector<8x72xf32>, vector<72x128xf32>, vector<8x128xf32> -> vector<8x128xf32>
    %119 = vector.broadcast %3 : vector<8x1xf32> to vector<8x128xf32>
    %120 = arith.addf %118, %119 : vector<8x128xf32>
    %121 = vector.extract_strided_slice %120 {offsets = [0, 0], sizes = [8, 64], strides = [1, 1]} : vector<8x128xf32> to vector<8x64xf32>
    %cst_48 = arith.constant dense<0.000000e+00> : vector<8xf32>
    %122 = vector.multi_reduction <add>, %121, %cst_48 [1] : vector<8x64xf32> to vector<8xf32>
    %123 = vector.shape_cast %122 : vector<8xf32> to vector<8x1xf32>
    %cst_49 = arith.constant dense<0.000000e+00> : vector<8x1xf32>
    %124 = tpu.matmul %6, %123, %cst_49 {dimension_numbers = #tpu.dot_dimension_numbers<[1], [0], [0], [1], [0, 0, 1, 1], [], []>} : vector<8x8xf32>, vector<8x1xf32>, vector<8x1xf32> -> vector<8x1xf32>
    %125 = vector.shape_cast %124 : vector<8x1xf32> to vector<8x1xf32>
    %126 = vector.broadcast %125 : vector<8x1xf32> to vector<8x64xf32>
    %127 = vector.extract_strided_slice %120 {offsets = [0, 64], sizes = [8, 64], strides = [1, 1]} : vector<8x128xf32> to vector<8x64xf32>
    %cst_50 = arith.constant dense<0.000000e+00> : vector<8xf32>
    %128 = vector.multi_reduction <add>, %127, %cst_50 [1] : vector<8x64xf32> to vector<8xf32>
    %129 = vector.shape_cast %128 : vector<8xf32> to vector<8x1xf32>
    %cst_51 = arith.constant dense<0.000000e+00> : vector<8x1xf32>
    %130 = tpu.matmul %6, %129, %cst_51 {dimension_numbers = #tpu.dot_dimension_numbers<[1], [0], [0], [1], [0, 0, 1, 1], [], []>} : vector<8x8xf32>, vector<8x1xf32>, vector<8x1xf32> -> vector<8x1xf32>
    %131 = vector.shape_cast %130 : vector<8x1xf32> to vector<8x1xf32>
    %132 = vector.broadcast %131 : vector<8x1xf32> to vector<8x64xf32>
    %133 = tpu.concatenate %126, %132 in 1 : vector<8x64xf32>, vector<8x64xf32> -> vector<8x128xf32>
    %134 = arith.subf %120, %133 : vector<8x128xf32>
    %135 = vector.extract_strided_slice %134 {offsets = [0, 0], sizes = [8, 64], strides = [1, 1]} : vector<8x128xf32> to vector<8x64xf32>
    %136 = arith.mulf %135, %135 : vector<8x64xf32>
    %cst_52 = arith.constant dense<0.000000e+00> : vector<8xf32>
    %137 = vector.multi_reduction <add>, %136, %cst_52 [1] : vector<8x64xf32> to vector<8xf32>
    %138 = vector.shape_cast %137 : vector<8xf32> to vector<8x1xf32>
    %cst_53 = arith.constant dense<0.000000e+00> : vector<8x1xf32>
    %139 = tpu.matmul %6, %138, %cst_53 {dimension_numbers = #tpu.dot_dimension_numbers<[1], [0], [0], [1], [0, 0, 1, 1], [], []>} : vector<8x8xf32>, vector<8x1xf32>, vector<8x1xf32> -> vector<8x1xf32>
    %cst_54 = arith.constant 9.99999974E-6 : f32
    %140 = vector.broadcast %cst_54 : f32 to vector<8x1xf32>
    %141 = arith.addf %139, %140 : vector<8x1xf32>
    %142 = math.rsqrt %141 : vector<8x1xf32>
    %143 = vector.shape_cast %142 : vector<8x1xf32> to vector<8x1xf32>
    %144 = vector.broadcast %143 : vector<8x1xf32> to vector<8x64xf32>
    %145 = vector.extract_strided_slice %134 {offsets = [0, 64], sizes = [8, 64], strides = [1, 1]} : vector<8x128xf32> to vector<8x64xf32>
    %146 = arith.mulf %145, %145 : vector<8x64xf32>
    %cst_55 = arith.constant dense<0.000000e+00> : vector<8xf32>
    %147 = vector.multi_reduction <add>, %146, %cst_55 [1] : vector<8x64xf32> to vector<8xf32>
    %148 = vector.shape_cast %147 : vector<8xf32> to vector<8x1xf32>
    %cst_56 = arith.constant dense<0.000000e+00> : vector<8x1xf32>
    %149 = tpu.matmul %6, %148, %cst_56 {dimension_numbers = #tpu.dot_dimension_numbers<[1], [0], [0], [1], [0, 0, 1, 1], [], []>} : vector<8x8xf32>, vector<8x1xf32>, vector<8x1xf32> -> vector<8x1xf32>
    %cst_57 = arith.constant 9.99999974E-6 : f32
    %150 = vector.broadcast %cst_57 : f32 to vector<8x1xf32>
    %151 = arith.addf %149, %150 : vector<8x1xf32>
    %152 = math.rsqrt %151 : vector<8x1xf32>
    %153 = vector.shape_cast %152 : vector<8x1xf32> to vector<8x1xf32>
    %154 = vector.broadcast %153 : vector<8x1xf32> to vector<8x64xf32>
    %155 = tpu.concatenate %144, %154 in 1 : vector<8x64xf32>, vector<8x64xf32> -> vector<8x128xf32>
    %156 = arith.mulf %134, %155 : vector<8x128xf32>
    %157 = vector.broadcast %4 : vector<8x1xf32> to vector<8x128xf32>
    %158 = arith.mulf %156, %157 : vector<8x128xf32>
    %159 = vector.broadcast %5 : vector<8x1xf32> to vector<8x128xf32>
    %160 = arith.addf %158, %159 : vector<8x128xf32>
    %161 = arith.negf %160 : vector<8x128xf32>
    %162 = math.exp %161 : vector<8x128xf32>
    %cst_58 = arith.constant 1.000000e+00 : f32
    %163 = vector.broadcast %cst_58 : f32 to vector<8x128xf32>
    %164 = arith.addf %163, %162 : vector<8x128xf32>
    %165 = arith.divf %163, %164 : vector<8x128xf32>
    %166 = arith.mulf %160, %165 : vector<8x128xf32>
    %c9_i32_59 = arith.constant 9 : i32
    %167 = tpu.dynamic_rotate %166 by %c9_i32_59 dim 1 : vector<8x128xf32>, i32 -> vector<8x128xf32>
    %168 = vector.broadcast %7 : vector<1x128xf32> to vector<8x128xf32>
    %169 = arith.mulf %167, %168 : vector<8x128xf32>
    %c8_i32_60 = arith.constant 8 : i32
    %170 = tpu.dynamic_rotate %166 by %c8_i32_60 dim 1 : vector<8x128xf32>, i32 -> vector<8x128xf32>
    %171 = vector.broadcast %8 : vector<1x128xf32> to vector<8x128xf32>
    %172 = arith.mulf %170, %171 : vector<8x128xf32>
    %c7_i32_61 = arith.constant 7 : i32
    %173 = tpu.dynamic_rotate %166 by %c7_i32_61 dim 1 : vector<8x128xf32>, i32 -> vector<8x128xf32>
    %174 = vector.broadcast %9 : vector<1x128xf32> to vector<8x128xf32>
    %175 = arith.mulf %173, %174 : vector<8x128xf32>
    %c1_i32_62 = arith.constant 1 : i32
    %176 = tpu.dynamic_rotate %166 by %c1_i32_62 dim 1 : vector<8x128xf32>, i32 -> vector<8x128xf32>
    %177 = vector.broadcast %10 : vector<1x128xf32> to vector<8x128xf32>
    %178 = arith.mulf %176, %177 : vector<8x128xf32>
    %c127_i32_63 = arith.constant 127 : i32
    %179 = tpu.dynamic_rotate %166 by %c127_i32_63 dim 1 : vector<8x128xf32>, i32 -> vector<8x128xf32>
    %180 = vector.broadcast %11 : vector<1x128xf32> to vector<8x128xf32>
    %181 = arith.mulf %179, %180 : vector<8x128xf32>
    %c121_i32_64 = arith.constant 121 : i32
    %182 = tpu.dynamic_rotate %166 by %c121_i32_64 dim 1 : vector<8x128xf32>, i32 -> vector<8x128xf32>
    %183 = vector.broadcast %12 : vector<1x128xf32> to vector<8x128xf32>
    %184 = arith.mulf %182, %183 : vector<8x128xf32>
    %c120_i32_65 = arith.constant 120 : i32
    %185 = tpu.dynamic_rotate %166 by %c120_i32_65 dim 1 : vector<8x128xf32>, i32 -> vector<8x128xf32>
    %186 = vector.broadcast %13 : vector<1x128xf32> to vector<8x128xf32>
    %187 = arith.mulf %185, %186 : vector<8x128xf32>
    %c119_i32_66 = arith.constant 119 : i32
    %188 = tpu.dynamic_rotate %166 by %c119_i32_66 dim 1 : vector<8x128xf32>, i32 -> vector<8x128xf32>
    %189 = vector.broadcast %14 : vector<1x128xf32> to vector<8x128xf32>
    %190 = arith.mulf %188, %189 : vector<8x128xf32>
    %191 = tpu.concatenate %169, %172, %175, %178, %166, %181, %184, %187, %190 in 0 : vector<8x128xf32>, vector<8x128xf32>, vector<8x128xf32>, vector<8x128xf32>, vector<8x128xf32>, vector<8x128xf32>, vector<8x128xf32>, vector<8x128xf32>, vector<8x128xf32> -> vector<72x128xf32>
    %c0_67 = arith.constant 0 : index
    %c0_68 = arith.constant 0 : index
    %192 = vector.load %arg4[%c0_67, %c0_68] : memref<8x72xf32, #tpu.memory_space<vmem>>, vector<8x72xf32>
    %cst_69 = arith.constant dense<0.000000e+00> : vector<8x128xf32>
    %193 = tpu.matmul %192, %191, %cst_69 {dimension_numbers = #tpu.dot_dimension_numbers<[1], [0], [0], [1], [0, 0, 1, 1], [], []>} : vector<8x72xf32>, vector<72x128xf32>, vector<8x128xf32> -> vector<8x128xf32>
    %194 = vector.broadcast %3 : vector<8x1xf32> to vector<8x128xf32>
    %195 = arith.addf %193, %194 : vector<8x128xf32>
    %196 = vector.extract_strided_slice %195 {offsets = [0, 0], sizes = [8, 64], strides = [1, 1]} : vector<8x128xf32> to vector<8x64xf32>
    %cst_70 = arith.constant dense<0.000000e+00> : vector<8xf32>
    %197 = vector.multi_reduction <add>, %196, %cst_70 [1] : vector<8x64xf32> to vector<8xf32>
    %198 = vector.shape_cast %197 : vector<8xf32> to vector<8x1xf32>
    %cst_71 = arith.constant dense<0.000000e+00> : vector<8x1xf32>
    %199 = tpu.matmul %6, %198, %cst_71 {dimension_numbers = #tpu.dot_dimension_numbers<[1], [0], [0], [1], [0, 0, 1, 1], [], []>} : vector<8x8xf32>, vector<8x1xf32>, vector<8x1xf32> -> vector<8x1xf32>
    %200 = vector.shape_cast %199 : vector<8x1xf32> to vector<8x1xf32>
    %201 = vector.broadcast %200 : vector<8x1xf32> to vector<8x64xf32>
    %202 = vector.extract_strided_slice %195 {offsets = [0, 64], sizes = [8, 64], strides = [1, 1]} : vector<8x128xf32> to vector<8x64xf32>
    %cst_72 = arith.constant dense<0.000000e+00> : vector<8xf32>
    %203 = vector.multi_reduction <add>, %202, %cst_72 [1] : vector<8x64xf32> to vector<8xf32>
    %204 = vector.shape_cast %203 : vector<8xf32> to vector<8x1xf32>
    %cst_73 = arith.constant dense<0.000000e+00> : vector<8x1xf32>
    %205 = tpu.matmul %6, %204, %cst_73 {dimension_numbers = #tpu.dot_dimension_numbers<[1], [0], [0], [1], [0, 0, 1, 1], [], []>} : vector<8x8xf32>, vector<8x1xf32>, vector<8x1xf32> -> vector<8x1xf32>
    %206 = vector.shape_cast %205 : vector<8x1xf32> to vector<8x1xf32>
    %207 = vector.broadcast %206 : vector<8x1xf32> to vector<8x64xf32>
    %208 = tpu.concatenate %201, %207 in 1 : vector<8x64xf32>, vector<8x64xf32> -> vector<8x128xf32>
    %209 = arith.subf %195, %208 : vector<8x128xf32>
    %210 = vector.extract_strided_slice %209 {offsets = [0, 0], sizes = [8, 64], strides = [1, 1]} : vector<8x128xf32> to vector<8x64xf32>
    %211 = arith.mulf %210, %210 : vector<8x64xf32>
    %cst_74 = arith.constant dense<0.000000e+00> : vector<8xf32>
    %212 = vector.multi_reduction <add>, %211, %cst_74 [1] : vector<8x64xf32> to vector<8xf32>
    %213 = vector.shape_cast %212 : vector<8xf32> to vector<8x1xf32>
    %cst_75 = arith.constant dense<0.000000e+00> : vector<8x1xf32>
    %214 = tpu.matmul %6, %213, %cst_75 {dimension_numbers = #tpu.dot_dimension_numbers<[1], [0], [0], [1], [0, 0, 1, 1], [], []>} : vector<8x8xf32>, vector<8x1xf32>, vector<8x1xf32> -> vector<8x1xf32>
    %cst_76 = arith.constant 9.99999974E-6 : f32
    %215 = vector.broadcast %cst_76 : f32 to vector<8x1xf32>
    %216 = arith.addf %214, %215 : vector<8x1xf32>
    %217 = math.rsqrt %216 : vector<8x1xf32>
    %218 = vector.shape_cast %217 : vector<8x1xf32> to vector<8x1xf32>
    %219 = vector.broadcast %218 : vector<8x1xf32> to vector<8x64xf32>
    %220 = vector.extract_strided_slice %209 {offsets = [0, 64], sizes = [8, 64], strides = [1, 1]} : vector<8x128xf32> to vector<8x64xf32>
    %221 = arith.mulf %220, %220 : vector<8x64xf32>
    %cst_77 = arith.constant dense<0.000000e+00> : vector<8xf32>
    %222 = vector.multi_reduction <add>, %221, %cst_77 [1] : vector<8x64xf32> to vector<8xf32>
    %223 = vector.shape_cast %222 : vector<8xf32> to vector<8x1xf32>
    %cst_78 = arith.constant dense<0.000000e+00> : vector<8x1xf32>
    %224 = tpu.matmul %6, %223, %cst_78 {dimension_numbers = #tpu.dot_dimension_numbers<[1], [0], [0], [1], [0, 0, 1, 1], [], []>} : vector<8x8xf32>, vector<8x1xf32>, vector<8x1xf32> -> vector<8x1xf32>
    %cst_79 = arith.constant 9.99999974E-6 : f32
    %225 = vector.broadcast %cst_79 : f32 to vector<8x1xf32>
    %226 = arith.addf %224, %225 : vector<8x1xf32>
    %227 = math.rsqrt %226 : vector<8x1xf32>
    %228 = vector.shape_cast %227 : vector<8x1xf32> to vector<8x1xf32>
    %229 = vector.broadcast %228 : vector<8x1xf32> to vector<8x64xf32>
    %230 = tpu.concatenate %219, %229 in 1 : vector<8x64xf32>, vector<8x64xf32> -> vector<8x128xf32>
    %231 = arith.mulf %209, %230 : vector<8x128xf32>
    %232 = vector.broadcast %4 : vector<8x1xf32> to vector<8x128xf32>
    %233 = arith.mulf %231, %232 : vector<8x128xf32>
    %234 = vector.broadcast %5 : vector<8x1xf32> to vector<8x128xf32>
    %235 = arith.addf %233, %234 : vector<8x128xf32>
    %236 = arith.negf %235 : vector<8x128xf32>
    %237 = math.exp %236 : vector<8x128xf32>
    %cst_80 = arith.constant 1.000000e+00 : f32
    %238 = vector.broadcast %cst_80 : f32 to vector<8x128xf32>
    %239 = arith.addf %238, %237 : vector<8x128xf32>
    %240 = arith.divf %238, %239 : vector<8x128xf32>
    %241 = arith.mulf %235, %240 : vector<8x128xf32>
    %c0_81 = arith.constant 0 : index
    %c0_82 = arith.constant 0 : index
    %c0_83 = arith.constant 0 : index
    %242 = vector.load %arg2[%c0_81, %c0_82, %c0_83] : memref<1x8x128xf32, #tpu.memory_space<vmem>>, vector<1x8x128xf32>
    %243 = vector.shape_cast %242 : vector<1x8x128xf32> to vector<8x128xf32>
    %244 = arith.addf %241, %243 : vector<8x128xf32>
    %c0_84 = arith.constant 0 : index
    %c0_85 = arith.constant 0 : index
    %c0_86 = arith.constant 0 : index
    %245 = vector.load %arg7[%c0_84, %c0_85, %c0_86] : memref<1x8x128xf32, #tpu.memory_space<vmem>>, vector<1x8x128xf32>
    %246 = vector.shape_cast %245 : vector<1x8x128xf32> to vector<8x128xf32>
    %247 = vector.shape_cast %244 : vector<8x128xf32> to vector<1x8x128xf32>
    tpu.vector_store %arg7[%c0_84, %c0_85, %c0_86], %247 {strides = array<i32>} : memref<1x8x128xf32, #tpu.memory_space<vmem>>, vector<1x8x128xf32>,
    return
  }
  func.func @transform_0(%arg0: i32) -> (i32, i32, i32) {
    %c0_i32 = arith.constant 0 : i32
    %c0_i32_0 = arith.constant 0 : i32
    %c0_i32_1 = arith.constant 0 : i32
    return %arg0, %c0_i32, %c0_i32_0 : i32, i32, i32
  }
  func.func @transform_1(%arg0: i32) -> (i32, i32, i32) {
    %c0_i32 = arith.constant 0 : i32
    %c0_i32_0 = arith.constant 0 : i32
    %c0_i32_1 = arith.constant 0 : i32
    return %arg0, %c0_i32, %c0_i32_0 : i32, i32, i32
  }
  func.func @transform_2(%arg0: i32) -> (i32, i32) {
    %c0_i32 = arith.constant 0 : i32
    %c0_i32_0 = arith.constant 0 : i32
    %c0_i32_1 = arith.constant 0 : i32
    return %c0_i32, %c0_i32_0 : i32, i32
  }
  func.func @transform_3(%arg0: i32) -> (i32, i32) {
    %c0_i32 = arith.constant 0 : i32
    %c0_i32_0 = arith.constant 0 : i32
    %c0_i32_1 = arith.constant 0 : i32
    return %c0_i32, %c0_i32_0 : i32, i32
  }
  func.func @transform_4(%arg0: i32) -> (i32, i32) {
    %c0_i32 = arith.constant 0 : i32
    %c0_i32_0 = arith.constant 0 : i32
    %c0_i32_1 = arith.constant 0 : i32
    return %c0_i32, %c0_i32_0 : i32, i32
  }
  func.func @transform_5(%arg0: i32) -> (i32, i32) {
    %c0_i32 = arith.constant 0 : i32
    %c0_i32_0 = arith.constant 0 : i32
    %c0_i32_1 = arith.constant 0 : i32
    return %c0_i32, %c0_i32_0 : i32, i32
  }
  func.func @transform_6(%arg0: i32) -> (i32, i32, i32) {
    %c0_i32 = arith.constant 0 : i32
    %c0_i32_0 = arith.constant 0 : i32
    %c0_i32_1 = arith.constant 0 : i32
    return %arg0, %c0_i32, %c0_i32_0 : i32, i32, i32
  }
}

</mosaic_0001>

<llo_original>
// kernel: down_forward.1
$region0: #{down_forward.1}
  #allocation0 [shape = 'u32[]', space=smem, size = 0x4, offset = 0x4, fixed_abs, tag = 'smem constant byte address 0x4 - core index']
  #allocation1 [shape = 'u32[144,128]{1,0:T(1,128)}', space=vmem, size = 0x12000, scoped, tag = 'internal scratch']
  %s0 = inlined_call_operand.vmem [shape: f32[1,8,128], index: 0, kind: input, shape index: {}]
  %s1 = inlined_call_operand.vmem [shape: f32[1,8,128], index: 1, kind: input, shape index: {}]
  %s2 = inlined_call_operand.vmem [shape: f32[8,72], index: 2, kind: input, shape index: {}]
  %s3 = inlined_call_operand.vmem [shape: f32[8,72], index: 3, kind: input, shape index: {}]
  %s4 = inlined_call_operand.vmem [shape: f32[8,14], index: 4, kind: input, shape index: {}]
  %s5 = inlined_call_operand.vmem [shape: f32[9,128], index: 5, kind: input, shape index: {}]
  %s6 = inlined_call_operand.vmem [shape: f32[1,8,128], index: 6, kind: output, shape index: {}]
  %s7 = sld [smem:[#allocation0]]
  $region34: #{down_forward.1} parent=0
    _
  %s9 = ssub.s32 1, %s7
  %s10 = scalar_select 0, %s9, %s7
  // Predicated region
  $region2: #{down_forward.1} parent=0 // pred_check
    _
  $region3: #{down_forward.1} parent=0 // pred_check_branch
    %12 = sbr.rel (0) target = $region5
  $region4: #{down_forward.1} parent=0 // pred_region
    _
  $region5: #{down_forward.1} parent=0 // pred_fallthru
    _
  // Predicated region
  $region6: #{down_forward.1} parent=0 // pred_check
    _
  $region7: #{down_forward.1} parent=0 // pred_check_branch
    %14 = sbr.rel (0) target = $region9
  $region8: #{down_forward.1} parent=0 // pred_region
    _
  $region9: #{down_forward.1} parent=0 // pred_fallthru
    _
  // Predicated region
  $region10: #{down_forward.1} parent=0 // pred_check
    _
  $region11: #{down_forward.1} parent=0 // pred_check_branch
    %16 = sbr.rel (0) target = $region13
  $region12: #{down_forward.1} parent=0 // pred_region
    _
  $region13: #{down_forward.1} parent=0 // pred_fallthru
    _
  // Predicated region
  $region14: #{down_forward.1} parent=0 // pred_check
    _
  $region15: #{down_forward.1} parent=0 // pred_check_branch
    %18 = sbr.rel (0) target = $region17
  $region16: #{down_forward.1} parent=0 // pred_region
    _
  $region17: #{down_forward.1} parent=0 // pred_fallthru
    _
  // Predicated region
  $region18: #{down_forward.1} parent=0 // pred_check
    _
  $region19: #{down_forward.1} parent=0 // pred_check_branch
    %20 = sbr.rel (0) target = $region21
  $region20: #{down_forward.1} parent=0 // pred_region
    _
  $region21: #{down_forward.1} parent=0 // pred_fallthru
    _
  // Predicated region
  $region22: #{down_forward.1} parent=0 // pred_check
    _
  $region23: #{down_forward.1} parent=0 // pred_check_branch
    %22 = sbr.rel (0) target = $region25
  $region24: #{down_forward.1} parent=0 // pred_region
    _
  $region25: #{down_forward.1} parent=0 // pred_fallthru
    _
  %v23 = vld [vmem:[%s4] sm:$0xff]
  %v24 = vld [vmem:[%s5] sm:$0x1]
  %v25 = vld [vmem:[%s5 + $0x1] sm:$0x1]
  %v26 = vld [vmem:[%s5 + $0x2] sm:$0x1]
  %v27 = vld [vmem:[%s5 + $0x3] sm:$0x1]
  %v28 = vld [vmem:[%s5 + $0x5] sm:$0x1]
  %v29 = vld [vmem:[%s5 + $0x6] sm:$0x1]
  %v30 = vld [vmem:[%s5 + $0x7] sm:$0x1]
  %v31 = vld [vmem:[%s5 + $0x8] sm:$0x1]
  %v32 = vld [vmem:[%s0] sm:$0xff]
  %33 = vrot.lane.b32.xlu0 %v32, 9
  %v34 = vpop.permute.xlu0 %33
  %v35 = vlaneseq
  %v36 = vshrl.u32 %v35, 7
  %v37 = vsub.s32 0, %v36
  %v38 = vrot.slane %v24, %v37
  %v39 = vmul.f32 %v34, %v38
  %40 = vrot.lane.b32.xlu0 %v32, 8
  %v41 = vpop.permute.xlu0 %40
  %v42 = vlaneseq
  %v43 = vshrl.u32 %v42, 7
  %v44 = vsub.s32 0, %v43
  %v45 = vrot.slane %v25, %v44
  %v46 = vmul.f32 %v41, %v45
  %47 = vrot.lane.b32.xlu0 %v32, 7
  %v48 = vpop.permute.xlu0 %47
  %v49 = vlaneseq
  %v50 = vshrl.u32 %v49, 7
  %v51 = vsub.s32 0, %v50
  %v52 = vrot.slane %v26, %v51
  %v53 = vmul.f32 %v48, %v52
  %54 = vrot.lane.b32.xlu0 %v32, 1
  %v55 = vpop.permute.xlu0 %54
  %v56 = vlaneseq
  %v57 = vshrl.u32 %v56, 7
  %v58 = vsub.s32 0, %v57
  %v59 = vrot.slane %v27, %v58
  %v60 = vmul.f32 %v55, %v59
  %61 = vrot.lane.b32.xlu0 %v32, 127
  %v62 = vpop.permute.xlu0 %61
  %v63 = vlaneseq
  %v64 = vshrl.u32 %v63, 7
  %v65 = vsub.s32 0, %v64
  %v66 = vrot.slane %v28, %v65
  %v67 = vmul.f32 %v62, %v66
  %68 = vrot.lane.b32.xlu0 %v32, 121
  %v69 = vpop.permute.xlu0 %68
  %v70 = vlaneseq
  %v71 = vshrl.u32 %v70, 7
  %v72 = vsub.s32 0, %v71
  %v73 = vrot.slane %v29, %v72
  %v74 = vmul.f32 %v69, %v73
  %75 = vrot.lane.b32.xlu0 %v32, 120
  %v76 = vpop.permute.xlu0 %75
  %v77 = vlaneseq
  %v78 = vshrl.u32 %v77, 7
  %v79 = vsub.s32 0, %v78
  %v80 = vrot.slane %v30, %v79
  %v81 = vmul.f32 %v76, %v80
  %82 = vrot.lane.b32.xlu0 %v32, 119
  %v83 = vpop.permute.xlu0 %82
  %v84 = vlaneseq
  %v85 = vshrl.u32 %v84, 7
  %v86 = vsub.s32 0, %v85
  %v87 = vrot.slane %v31, %v86
  %v88 = vmul.f32 %v83, %v87
  %v89 = vld [vmem:[%s2] sm:$0xff]
  %91 = vset.pattern.permute.xlu0 0
  %92 = vperm.xlu0 %91, %v23
  %v93 = vpop.permute.xlu0 %92
  %vm95 = vcmask 588800
  %v97 = vsel %vm95, %v89, 0
  %99 = vmatprep.subr.mxu0 0.0
  %100 = vmatpush1.msra.mxu0 %v39
  %101 = vmatprep.subr.mxu0 0.0
  %102 = vmatpush1.msra.mxu0 %v46
  %103 = vmatprep.subr.mxu0 0.0
  %104 = vmatpush1.msra.mxu0 %v53
  %105 = vmatprep.subr.mxu0 0.0
  %106 = vmatpush1.msra.mxu0 %v60
  %107 = vmatprep.subr.mxu0 0.0
  %108 = vmatpush1.msra.mxu0 %v32
  %109 = vmatprep.subr.mxu0 0.0
  %110 = vmatpush1.msra.mxu0 %v67
  %111 = vmatprep.subr.mxu0 0.0
  %112 = vmatpush1.msra.mxu0 %v74
  %113 = vmatprep.subr.mxu0 0.0
  %114 = vmatpush1.msra.mxu0 %v81
  %115 = vmatprep.subr.mxu0 0.0
  %116 = vmatpush1.msra.mxu0 %v88
  %117 = vmatprep.subr.mxu0 0.0
  %118 = vmatpush1.msra.mxu0 0.0
  %119 = vmatprep.subr.mxu0 0.0
  %120 = vmatpush1.msra.mxu0 0.0
  %121 = vmatprep.subr.mxu0 0.0
  %122 = vmatpush1.msra.mxu0 0.0
  %123 = vmatprep.subr.mxu0 0.0
  %124 = vmatpush1.msra.mxu0 0.0
  %125 = vmatprep.subr.mxu0 0.0
  %126 = vmatpush1.msra.mxu0 0.0
  %127 = vmatprep.subr.mxu0 0.0
  %128 = vmatpush1.msra.mxu0 0.0
  %129 = vmatprep.subr.mxu0 0.0
  %130 = vmatpush1.msra.mxu0 0.0
  %131 = vmatprep.subr.mxu0 0.0
  %132 = vmatpush1.msra.mxu0 0.0
  %133 = vmatprep.subr.mxu0 0.0
  %134 = vmatpush1.msra.mxu0 0.0
  %135 = vmatprep.subr.mxu0 0.0
  %136 = vmatpush1.msra.mxu0 0.0
  %137 = vmatprep.subr.mxu0 0.0
  %138 = vmatpush1.msra.mxu0 0.0
  %139 = vmatprep.subr.mxu0 0.0
  %140 = vmatpush1.msra.mxu0 0.0
  %141 = vmatprep.subr.mxu0 0.0
  %142 = vmatpush1.msra.mxu0 0.0
  %143 = vmatprep.subr.mxu0 0.0
  %144 = vmatpush1.msra.mxu0 0.0
  %145 = vmatprep.subr.mxu0 0.0
  %146 = vmatpush1.msra.mxu0 0.0
  %147 = vmatprep.subr.mxu0 0.0
  %148 = vmatpush1.msra.mxu0 0.0
  %149 = vmatprep.subr.mxu0 0.0
  %150 = vmatpush1.msra.mxu0 0.0
  %151 = vmatprep.subr.mxu0 0.0
  %152 = vmatpush1.msra.mxu0 0.0
  %153 = vmatprep.subr.mxu0 0.0
  %154 = vmatpush1.msra.mxu0 0.0
  %155 = vmatprep.subr.mxu0 0.0
  %156 = vmatpush1.msra.mxu0 0.0
  %157 = vmatprep.subr.mxu0 0.0
  %158 = vmatpush1.msra.mxu0 0.0
  %159 = vmatprep.subr.mxu0 0.0
  %160 = vmatpush1.msra.mxu0 0.0
  %161 = vmatprep.subr.mxu0 0.0
  %162 = vmatpush1.msra.mxu0 0.0
  %163 = vmatprep.mubr.f32.mxu0 0.0
  %164 = vmatmul.mubr.f32.gmra.mrb[0].mxu0 %v97
  %v165 = vpop.f32.mrb[0].mxu0
  %v166 = vadd.f32 %v93, %v165
  %v167 = vpop.f32.mrb[0].mxu0
  %168 = vdwg.mxu0
  %vm169 = vcmask 523264
  %v170 = vsel %vm169, %v166, 0.0
  %171 = vadd.xlane.f32.xlu0 %v170
  %v172 = vpop.xlane.xlu0 %171
  %173 = vrot.lane.b32.xlu0 %v23, 122
  %v174 = vpop.permute.xlu0 %173
  %vm175 = vcmask 64512
  %v176 = vsel %vm175, %v174, 0
  %178 = vmatprep.subr.mxu0 0.0
  %179 = vmatpush1.msra.mxu0 %v172
  %180 = vmatprep.subr.mxu0 0.0
  %181 = vmatpush1.msra.mxu0 0.0
  %182 = vmatprep.subr.mxu0 0.0
  %183 = vmatpush1.msra.mxu0 0.0
  %184 = vmatprep.subr.mxu0 0.0
  %185 = vmatpush1.msra.mxu0 0.0
  %186 = vmatprep.subr.mxu0 0.0
  %187 = vmatpush1.msra.mxu0 0.0
  %188 = vmatprep.subr.mxu0 0.0
  %189 = vmatpush1.msra.mxu0 0.0
  %190 = vmatprep.subr.mxu0 0.0
  %191 = vmatpush1.msra.mxu0 0.0
  %192 = vmatprep.subr.mxu0 0.0
  %193 = vmatpush1.msra.mxu0 0.0
  %194 = vmatprep.subr.mxu0 0.0
  %195 = vmatpush1.msra.mxu0 0.0
  %196 = vmatprep.subr.mxu0 0.0
  %197 = vmatpush1.msra.mxu0 0.0
  %198 = vmatprep.subr.mxu0 0.0
  %199 = vmatpush1.msra.mxu0 0.0
  %200 = vmatprep.subr.mxu0 0.0
  %201 = vmatpush1.msra.mxu0 0.0
  %202 = vmatprep.subr.mxu0 0.0
  %203 = vmatpush1.msra.mxu0 0.0
  %204 = vmatprep.subr.mxu0 0.0
  %205 = vmatpush1.msra.mxu0 0.0
  %206 = vmatprep.subr.mxu0 0.0
  %207 = vmatpush1.msra.mxu0 0.0
  %208 = vmatprep.subr.mxu0 0.0
  %209 = vmatpush1.msra.mxu0 0.0
  %210 = vmatprep.subr.mxu0 0.0
  %211 = vmatpush1.msra.mxu0 0.0
  %212 = vmatprep.subr.mxu0 0.0
  %213 = vmatpush1.msra.mxu0 0.0
  %214 = vmatprep.subr.mxu0 0.0
  %215 = vmatpush1.msra.mxu0 0.0
  %216 = vmatprep.subr.mxu0 0.0
  %217 = vmatpush1.msra.mxu0 0.0
  %218 = vmatprep.subr.mxu0 0.0
  %219 = vmatpush1.msra.mxu0 0.0
  %220 = vmatprep.subr.mxu0 0.0
  %221 = vmatpush1.msra.mxu0 0.0
  %222 = vmatprep.subr.mxu0 0.0
  %223 = vmatpush1.msra.mxu0 0.0
  %224 = vmatprep.subr.mxu0 0.0
  %225 = vmatpush1.msra.mxu0 0.0
  %226 = vmatprep.subr.mxu0 0.0
  %227 = vmatpush1.msra.mxu0 0.0
  %228 = vmatprep.subr.mxu0 0.0
  %229 = vmatpush1.msra.mxu0 0.0
  %230 = vmatprep.subr.mxu0 0.0
  %231 = vmatpush1.msra.mxu0 0.0
  %232 = vmatprep.subr.mxu0 0.0
  %233 = vmatpush1.msra.mxu0 0.0
  %234 = vmatprep.subr.mxu0 0.0
  %235 = vmatpush1.msra.mxu0 0.0
  %236 = vmatprep.subr.mxu0 0.0
  %237 = vmatpush1.msra.mxu0 0.0
  %238 = vmatprep.subr.mxu0 0.0
  %239 = vmatpush1.msra.mxu0 0.0
  %240 = vmatprep.subr.mxu0 0.0
  %241 = vmatpush1.msra.mxu0 0.0
  %242 = vmatprep.mubr.f32.mxu0 0.0
  %243 = vmatmul.mubr.f32.gmra.mrb[0].mxu0 %v176
  %v244 = vpop.f32.mrb[0].mxu0
  %v245 = vadd.f32 0.0, %v244
  %v246 = vpop.f32.mrb[0].mxu0
  %247 = vdwg.mxu0
  %249 = vset.pattern.permute.xlu0 0
  %250 = vperm.xlu0 %249, %v245
  %v251 = vpop.permute.xlu0 %250
  %254 = vrot.lane.b32.xlu0 %v166, 64
  %v255 = vpop.permute.xlu0 %254
  %v257 = vsel %vm169, %v255, 0.0
  %258 = vadd.xlane.f32.xlu0 %v257
  %v259 = vpop.xlane.xlu0 %258
  %260 = vmatprep.subr.mxu0 0.0
  %261 = vmatpush1.msra.mxu0 %v259
  %262 = vmatprep.subr.mxu0 0.0
  %263 = vmatpush1.msra.mxu0 0.0
  %264 = vmatprep.subr.mxu0 0.0
  %265 = vmatpush1.msra.mxu0 0.0
  %266 = vmatprep.subr.mxu0 0.0
  %267 = vmatpush1.msra.mxu0 0.0
  %268 = vmatprep.subr.mxu0 0.0
  %269 = vmatpush1.msra.mxu0 0.0
  %270 = vmatprep.subr.mxu0 0.0
  %271 = vmatpush1.msra.mxu0 0.0
  %272 = vmatprep.subr.mxu0 0.0
  %273 = vmatpush1.msra.mxu0 0.0
  %274 = vmatprep.subr.mxu0 0.0
  %275 = vmatpush1.msra.mxu0 0.0
  %276 = vmatprep.subr.mxu0 0.0
  %277 = vmatpush1.msra.mxu0 0.0
  %278 = vmatprep.subr.mxu0 0.0
  %279 = vmatpush1.msra.mxu0 0.0
  %280 = vmatprep.subr.mxu0 0.0
  %281 = vmatpush1.msra.mxu0 0.0
  %282 = vmatprep.subr.mxu0 0.0
  %283 = vmatpush1.msra.mxu0 0.0
  %284 = vmatprep.subr.mxu0 0.0
  %285 = vmatpush1.msra.mxu0 0.0
  %286 = vmatprep.subr.mxu0 0.0
  %287 = vmatpush1.msra.mxu0 0.0
  %288 = vmatprep.subr.mxu0 0.0
  %289 = vmatpush1.msra.mxu0 0.0
  %290 = vmatprep.subr.mxu0 0.0
  %291 = vmatpush1.msra.mxu0 0.0
  %292 = vmatprep.subr.mxu0 0.0
  %293 = vmatpush1.msra.mxu0 0.0
  %294 = vmatprep.subr.mxu0 0.0
  %295 = vmatpush1.msra.mxu0 0.0
  %296 = vmatprep.subr.mxu0 0.0
  %297 = vmatpush1.msra.mxu0 0.0
  %298 = vmatprep.subr.mxu0 0.0
  %299 = vmatpush1.msra.mxu0 0.0
  %300 = vmatprep.subr.mxu0 0.0
  %301 = vmatpush1.msra.mxu0 0.0
  %302 = vmatprep.subr.mxu0 0.0
  %303 = vmatpush1.msra.mxu0 0.0
  %304 = vmatprep.subr.mxu0 0.0
  %305 = vmatpush1.msra.mxu0 0.0
  %306 = vmatprep.subr.mxu0 0.0
  %307 = vmatpush1.msra.mxu0 0.0
  %308 = vmatprep.subr.mxu0 0.0
  %309 = vmatpush1.msra.mxu0 0.0
  %310 = vmatprep.subr.mxu0 0.0
  %311 = vmatpush1.msra.mxu0 0.0
  %312 = vmatprep.subr.mxu0 0.0
  %313 = vmatpush1.msra.mxu0 0.0
  %314 = vmatprep.subr.mxu0 0.0
  %315 = vmatpush1.msra.mxu0 0.0
  %316 = vmatprep.subr.mxu0 0.0
  %317 = vmatpush1.msra.mxu0 0.0
  %318 = vmatprep.subr.mxu0 0.0
  %319 = vmatpush1.msra.mxu0 0.0
  %320 = vmatprep.subr.mxu0 0.0
  %321 = vmatpush1.msra.mxu0 0.0
  %322 = vmatprep.subr.mxu0 0.0
  %323 = vmatpush1.msra.mxu0 0.0
  %324 = vmatprep.mubr.f32.mxu0 0.0
  %325 = vmatmul.mubr.f32.gmra.mrb[0].mxu0 %v176
  %v326 = vpop.f32.mrb[0].mxu0
  %v327 = vadd.f32 0.0, %v326
  %v328 = vpop.f32.mrb[0].mxu0
  %329 = vdwg.mxu0
  %331 = vset.pattern.permute.xlu0 0
  %332 = vperm.xlu0 %331, %v327
  %v333 = vpop.permute.xlu0 %332
  %v335 = vsel %vm169, %v251, %v333
  %v336 = vsub.f32 %v166, %v335
  %v337 = vmul.f32 %v336, %v336
  %v338 = vsel %vm169, %v337, 0.0
  %339 = vadd.xlane.f32.xlu0 %v338
  %v340 = vpop.xlane.xlu0 %339
  %341 = vmatprep.subr.mxu0 0.0
  %342 = vmatpush1.msra.mxu0 %v340
  %343 = vmatprep.subr.mxu0 0.0
  %344 = vmatpush1.msra.mxu0 0.0
  %345 = vmatprep.subr.mxu0 0.0
  %346 = vmatpush1.msra.mxu0 0.0
  %347 = vmatprep.subr.mxu0 0.0
  %348 = vmatpush1.msra.mxu0 0.0
  %349 = vmatprep.subr.mxu0 0.0
  %350 = vmatpush1.msra.mxu0 0.0
  %351 = vmatprep.subr.mxu0 0.0
  %352 = vmatpush1.msra.mxu0 0.0
  %353 = vmatprep.subr.mxu0 0.0
  %354 = vmatpush1.msra.mxu0 0.0
  %355 = vmatprep.subr.mxu0 0.0
  %356 = vmatpush1.msra.mxu0 0.0
  %357 = vmatprep.subr.mxu0 0.0
  %358 = vmatpush1.msra.mxu0 0.0
  %359 = vmatprep.subr.mxu0 0.0
  %360 = vmatpush1.msra.mxu0 0.0
  %361 = vmatprep.subr.mxu0 0.0
  %362 = vmatpush1.msra.mxu0 0.0
  %363 = vmatprep.subr.mxu0 0.0
  %364 = vmatpush1.msra.mxu0 0.0
  %365 = vmatprep.subr.mxu0 0.0
  %366 = vmatpush1.msra.mxu0 0.0
  %367 = vmatprep.subr.mxu0 0.0
  %368 = vmatpush1.msra.mxu0 0.0
  %369 = vmatprep.subr.mxu0 0.0
  %370 = vmatpush1.msra.mxu0 0.0
  %371 = vmatprep.subr.mxu0 0.0
  %372 = vmatpush1.msra.mxu0 0.0
  %373 = vmatprep.subr.mxu0 0.0
  %374 = vmatpush1.msra.mxu0 0.0
  %375 = vmatprep.subr.mxu0 0.0
  %376 = vmatpush1.msra.mxu0 0.0
  %377 = vmatprep.subr.mxu0 0.0
  %378 = vmatpush1.msra.mxu0 0.0
  %379 = vmatprep.subr.mxu0 0.0
  %380 = vmatpush1.msra.mxu0 0.0
  %381 = vmatprep.subr.mxu0 0.0
  %382 = vmatpush1.msra.mxu0 0.0
  %383 = vmatprep.subr.mxu0 0.0
  %384 = vmatpush1.msra.mxu0 0.0
  %385 = vmatprep.subr.mxu0 0.0
  %386 = vmatpush1.msra.mxu0 0.0
  %387 = vmatprep.subr.mxu0 0.0
  %388 = vmatpush1.msra.mxu0 0.0
  %389 = vmatprep.subr.mxu0 0.0
  %390 = vmatpush1.msra.mxu0 0.0
  %391 = vmatprep.subr.mxu0 0.0
  %392 = vmatpush1.msra.mxu0 0.0
  %393 = vmatprep.subr.mxu0 0.0
  %394 = vmatpush1.msra.mxu0 0.0
  %395 = vmatprep.subr.mxu0 0.0
  %396 = vmatpush1.msra.mxu0 0.0
  %397 = vmatprep.subr.mxu0 0.0
  %398 = vmatpush1.msra.mxu0 0.0
  %399 = vmatprep.subr.mxu0 0.0
  %400 = vmatpush1.msra.mxu0 0.0
  %401 = vmatprep.subr.mxu0 0.0
  %402 = vmatpush1.msra.mxu0 0.0
  %403 = vmatprep.subr.mxu0 0.0
  %404 = vmatpush1.msra.mxu0 0.0
  %405 = vmatprep.mubr.f32.mxu0 0.0
  %406 = vmatmul.mubr.f32.gmra.mrb[0].mxu0 %v176
  %v407 = vpop.f32.mrb[0].mxu0
  %v408 = vadd.f32 1e-05, %v407
  %v409 = vpop.f32.mrb[0].mxu0
  %410 = vdwg.mxu0
  %v411 = vrsqrt.pop %v408
  %413 = vset.pattern.permute.xlu0 0
  %414 = vperm.xlu0 %413, %v411
  %v415 = vpop.permute.xlu0 %414
  %418 = vrot.lane.b32.xlu0 %v337, 64
  %v419 = vpop.permute.xlu0 %418
  %v421 = vsel %vm169, %v419, 0.0
  %422 = vadd.xlane.f32.xlu0 %v421
  %v423 = vpop.xlane.xlu0 %422
  %424 = vmatprep.subr.mxu0 0.0
  %425 = vmatpush1.msra.mxu0 %v423
  %426 = vmatprep.subr.mxu0 0.0
  %427 = vmatpush1.msra.mxu0 0.0
  %428 = vmatprep.subr.mxu0 0.0
  %429 = vmatpush1.msra.mxu0 0.0
  %430 = vmatprep.subr.mxu0 0.0
  %431 = vmatpush1.msra.mxu0 0.0
  %432 = vmatprep.subr.mxu0 0.0
  %433 = vmatpush1.msra.mxu0 0.0
  %434 = vmatprep.subr.mxu0 0.0
  %435 = vmatpush1.msra.mxu0 0.0
  %436 = vmatprep.subr.mxu0 0.0
  %437 = vmatpush1.msra.mxu0 0.0
  %438 = vmatprep.subr.mxu0 0.0
  %439 = vmatpush1.msra.mxu0 0.0
  %440 = vmatprep.subr.mxu0 0.0
  %441 = vmatpush1.msra.mxu0 0.0
  %442 = vmatprep.subr.mxu0 0.0
  %443 = vmatpush1.msra.mxu0 0.0
  %444 = vmatprep.subr.mxu0 0.0
  %445 = vmatpush1.msra.mxu0 0.0
  %446 = vmatprep.subr.mxu0 0.0
  %447 = vmatpush1.msra.mxu0 0.0
  %448 = vmatprep.subr.mxu0 0.0
  %449 = vmatpush1.msra.mxu0 0.0
  %450 = vmatprep.subr.mxu0 0.0
  %451 = vmatpush1.msra.mxu0 0.0
  %452 = vmatprep.subr.mxu0 0.0
  %453 = vmatpush1.msra.mxu0 0.0
  %454 = vmatprep.subr.mxu0 0.0
  %455 = vmatpush1.msra.mxu0 0.0
  %456 = vmatprep.subr.mxu0 0.0
  %457 = vmatpush1.msra.mxu0 0.0
  %458 = vmatprep.subr.mxu0 0.0
  %459 = vmatpush1.msra.mxu0 0.0
  %460 = vmatprep.subr.mxu0 0.0
  %461 = vmatpush1.msra.mxu0 0.0
  %462 = vmatprep.subr.mxu0 0.0
  %463 = vmatpush1.msra.mxu0 0.0
  %464 = vmatprep.subr.mxu0 0.0
  %465 = vmatpush1.msra.mxu0 0.0
  %466 = vmatprep.subr.mxu0 0.0
  %467 = vmatpush1.msra.mxu0 0.0
  %468 = vmatprep.subr.mxu0 0.0
  %469 = vmatpush1.msra.mxu0 0.0
  %470 = vmatprep.subr.mxu0 0.0
  %471 = vmatpush1.msra.mxu0 0.0
  %472 = vmatprep.subr.mxu0 0.0
  %473 = vmatpush1.msra.mxu0 0.0
  %474 = vmatprep.subr.mxu0 0.0
  %475 = vmatpush1.msra.mxu0 0.0
  %476 = vmatprep.subr.mxu0 0.0
  %477 = vmatpush1.msra.mxu0 0.0
  %478 = vmatprep.subr.mxu0 0.0
  %479 = vmatpush1.msra.mxu0 0.0
  %480 = vmatprep.subr.mxu0 0.0
  %481 = vmatpush1.msra.mxu0 0.0
  %482 = vmatprep.subr.mxu0 0.0
  %483 = vmatpush1.msra.mxu0 0.0
  %484 = vmatprep.subr.mxu0 0.0
  %485 = vmatpush1.msra.mxu0 0.0
  %486 = vmatprep.subr.mxu0 0.0
  %487 = vmatpush1.msra.mxu0 0.0
  %488 = vmatprep.mubr.f32.mxu0 0.0
  %489 = vmatmul.mubr.f32.gmra.mrb[0].mxu0 %v176
  %v490 = vpop.f32.mrb[0].mxu0
  %v491 = vadd.f32 1e-05, %v490
  %v492 = vpop.f32.mrb[0].mxu0
  %493 = vdwg.mxu0
  %v494 = vrsqrt.pop %v491
  %496 = vset.pattern.permute.xlu0 0
  %497 = vperm.xlu0 %496, %v494
  %v498 = vpop.permute.xlu0 %497
  %v500 = vsel %vm169, %v415, %v498
  %v501 = vmul.f32 %v336, %v500
  %502 = vset.pattern.permute.xlu0 1
  %503 = vperm.xlu0 %502, %v23
  %v504 = vpop.permute.xlu0 %503
  %v506 = vmul.f32 %v501, %v504
  %507 = vset.pattern.permute.xlu0 2
  %508 = vperm.xlu0 %507, %v23
  %v509 = vpop.permute.xlu0 %508
  %v511 = vadd.f32 %v506, %v509
  %v512 = vxor.u32 %v511, 2147483648
  %v513 = vmul.f32 %v512, 1.442695
  %v514 = vpow.pop %v513
  %v515 = vadd.f32 %v514, 1.0
  %v516 = vrcp.pop %v515
  %v517 = vmul.f32 1.0, %v516
  %v518 = vmul.f32 %v511, %v517
  %519 = vrot.lane.b32.xlu0 %v518, 9
  %v520 = vpop.permute.xlu0 %519
  %v521 = vmul.f32 %v520, %v38
  %522 = vrot.lane.b32.xlu0 %v518, 8
  %v523 = vpop.permute.xlu0 %522
  %v524 = vmul.f32 %v523, %v45
  %525 = vrot.lane.b32.xlu0 %v518, 7
  %v526 = vpop.permute.xlu0 %525
  %v527 = vmul.f32 %v526, %v52
  %528 = vrot.lane.b32.xlu0 %v518, 1
  %v529 = vpop.permute.xlu0 %528
  %v530 = vmul.f32 %v529, %v59
  %531 = vrot.lane.b32.xlu0 %v518, 127
  %v532 = vpop.permute.xlu0 %531
  %v533 = vmul.f32 %v532, %v66
  %534 = vrot.lane.b32.xlu0 %v518, 121
  %v535 = vpop.permute.xlu0 %534
  %v536 = vmul.f32 %v535, %v73
  %537 = vrot.lane.b32.xlu0 %v518, 120
  %v538 = vpop.permute.xlu0 %537
  %v539 = vmul.f32 %v538, %v80
  %540 = vrot.lane.b32.xlu0 %v518, 119
  %v541 = vpop.permute.xlu0 %540
  %v542 = vmul.f32 %v541, %v87
  %v543 = vld [vmem:[%s3] sm:$0xff]
  %544 = vset.pattern.permute.xlu0 3
  %545 = vperm.xlu0 %544, %v23
  %v546 = vpop.permute.xlu0 %545
  %v549 = vsel %vm95, %v543, 0
  %551 = vmatprep.subr.mxu0 0.0
  %552 = vmatpush1.msra.mxu0 %v521
  %553 = vmatprep.subr.mxu0 0.0
  %554 = vmatpush1.msra.mxu0 %v524
  %555 = vmatprep.subr.mxu0 0.0
  %556 = vmatpush1.msra.mxu0 %v527
  %557 = vmatprep.subr.mxu0 0.0
  %558 = vmatpush1.msra.mxu0 %v530
  %559 = vmatprep.subr.mxu0 0.0
  %560 = vmatpush1.msra.mxu0 %v518
  %561 = vmatprep.subr.mxu0 0.0
  %562 = vmatpush1.msra.mxu0 %v533
  %563 = vmatprep.subr.mxu0 0.0
  %564 = vmatpush1.msra.mxu0 %v536
  %565 = vmatprep.subr.mxu0 0.0
  %566 = vmatpush1.msra.mxu0 %v539
  %567 = vmatprep.subr.mxu0 0.0
  %568 = vmatpush1.msra.mxu0 %v542
  %569 = vmatprep.subr.mxu0 0.0
  %570 = vmatpush1.msra.mxu0 0.0
  %571 = vmatprep.subr.mxu0 0.0
  %572 = vmatpush1.msra.mxu0 0.0
  %573 = vmatprep.subr.mxu0 0.0
  %574 = vmatpush1.msra.mxu0 0.0
  %575 = vmatprep.subr.mxu0 0.0
  %576 = vmatpush1.msra.mxu0 0.0
  %577 = vmatprep.subr.mxu0 0.0
  %578 = vmatpush1.msra.mxu0 0.0
  %579 = vmatprep.subr.mxu0 0.0
  %580 = vmatpush1.msra.mxu0 0.0
  %581 = vmatprep.subr.mxu0 0.0
  %582 = vmatpush1.msra.mxu0 0.0
  %583 = vmatprep.subr.mxu0 0.0
  %584 = vmatpush1.msra.mxu0 0.0
  %585 = vmatprep.subr.mxu0 0.0
  %586 = vmatpush1.msra.mxu0 0.0
  %587 = vmatprep.subr.mxu0 0.0
  %588 = vmatpush1.msra.mxu0 0.0
  %589 = vmatprep.subr.mxu0 0.0
  %590 = vmatpush1.msra.mxu0 0.0
  %591 = vmatprep.subr.mxu0 0.0
  %592 = vmatpush1.msra.mxu0 0.0
  %593 = vmatprep.subr.mxu0 0.0
  %594 = vmatpush1.msra.mxu0 0.0
  %595 = vmatprep.subr.mxu0 0.0
  %596 = vmatpush1.msra.mxu0 0.0
  %597 = vmatprep.subr.mxu0 0.0
  %598 = vmatpush1.msra.mxu0 0.0
  %599 = vmatprep.subr.mxu0 0.0
  %600 = vmatpush1.msra.mxu0 0.0
  %601 = vmatprep.subr.mxu0 0.0
  %602 = vmatpush1.msra.mxu0 0.0
  %603 = vmatprep.subr.mxu0 0.0
  %604 = vmatpush1.msra.mxu0 0.0
  %605 = vmatprep.subr.mxu0 0.0
  %606 = vmatpush1.msra.mxu0 0.0
  %607 = vmatprep.subr.mxu0 0.0
  %608 = vmatpush1.msra.mxu0 0.0
  %609 = vmatprep.subr.mxu0 0.0
  %610 = vmatpush1.msra.mxu0 0.0
  %611 = vmatprep.subr.mxu0 0.0
  %612 = vmatpush1.msra.mxu0 0.0
  %613 = vmatprep.subr.mxu0 0.0
  %614 = vmatpush1.msra.mxu0 0.0
  %615 = vmatprep.mubr.f32.mxu0 0.0
  %616 = vmatmul.mubr.f32.gmra.mrb[0].mxu0 %v549
  %v617 = vpop.f32.mrb[0].mxu0
  %v618 = vadd.f32 %v546, %v617
  %v619 = vpop.f32.mrb[0].mxu0
  %620 = vdwg.mxu0
  %v621 = vsel %vm169, %v618, 0.0
  %622 = vadd.xlane.f32.xlu0 %v621
  %v623 = vpop.xlane.xlu0 %622
  %624 = vmatprep.subr.mxu0 0.0
  %625 = vmatpush1.msra.mxu0 %v623
  %626 = vmatprep.subr.mxu0 0.0
  %627 = vmatpush1.msra.mxu0 0.0
  %628 = vmatprep.subr.mxu0 0.0
  %629 = vmatpush1.msra.mxu0 0.0
  %630 = vmatprep.subr.mxu0 0.0
  %631 = vmatpush1.msra.mxu0 0.0
  %632 = vmatprep.subr.mxu0 0.0
  %633 = vmatpush1.msra.mxu0 0.0
  %634 = vmatprep.subr.mxu0 0.0
  %635 = vmatpush1.msra.mxu0 0.0
  %636 = vmatprep.subr.mxu0 0.0
  %637 = vmatpush1.msra.mxu0 0.0
  %638 = vmatprep.subr.mxu0 0.0
  %639 = vmatpush1.msra.mxu0 0.0
  %640 = vmatprep.subr.mxu0 0.0
  %641 = vmatpush1.msra.mxu0 0.0
  %642 = vmatprep.subr.mxu0 0.0
  %643 = vmatpush1.msra.mxu0 0.0
  %644 = vmatprep.subr.mxu0 0.0
  %645 = vmatpush1.msra.mxu0 0.0
  %646 = vmatprep.subr.mxu0 0.0
  %647 = vmatpush1.msra.mxu0 0.0
  %648 = vmatprep.subr.mxu0 0.0
  %649 = vmatpush1.msra.mxu0 0.0
  %650 = vmatprep.subr.mxu0 0.0
  %651 = vmatpush1.msra.mxu0 0.0
  %652 = vmatprep.subr.mxu0 0.0
  %653 = vmatpush1.msra.mxu0 0.0
  %654 = vmatprep.subr.mxu0 0.0
  %655 = vmatpush1.msra.mxu0 0.0
  %656 = vmatprep.subr.mxu0 0.0
  %657 = vmatpush1.msra.mxu0 0.0
  %658 = vmatprep.subr.mxu0 0.0
  %659 = vmatpush1.msra.mxu0 0.0
  %660 = vmatprep.subr.mxu0 0.0
  %661 = vmatpush1.msra.mxu0 0.0
  %662 = vmatprep.subr.mxu0 0.0
  %663 = vmatpush1.msra.mxu0 0.0
  %664 = vmatprep.subr.mxu0 0.0
  %665 = vmatpush1.msra.mxu0 0.0
  %666 = vmatprep.subr.mxu0 0.0
  %667 = vmatpush1.msra.mxu0 0.0
  %668 = vmatprep.subr.mxu0 0.0
  %669 = vmatpush1.msra.mxu0 0.0
  %670 = vmatprep.subr.mxu0 0.0
  %671 = vmatpush1.msra.mxu0 0.0
  %672 = vmatprep.subr.mxu0 0.0
  %673 = vmatpush1.msra.mxu0 0.0
  %674 = vmatprep.subr.mxu0 0.0
  %675 = vmatpush1.msra.mxu0 0.0
  %676 = vmatprep.subr.mxu0 0.0
  %677 = vmatpush1.msra.mxu0 0.0
  %678 = vmatprep.subr.mxu0 0.0
  %679 = vmatpush1.msra.mxu0 0.0
  %680 = vmatprep.subr.mxu0 0.0
  %681 = vmatpush1.msra.mxu0 0.0
  %682 = vmatprep.subr.mxu0 0.0
  %683 = vmatpush1.msra.mxu0 0.0
  %684 = vmatprep.subr.mxu0 0.0
  %685 = vmatpush1.msra.mxu0 0.0
  %686 = vmatprep.subr.mxu0 0.0
  %687 = vmatpush1.msra.mxu0 0.0
  %688 = vmatprep.mubr.f32.mxu0 0.0
  %689 = vmatmul.mubr.f32.gmra.mrb[0].mxu0 %v176
  %v690 = vpop.f32.mrb[0].mxu0
  %v691 = vadd.f32 0.0, %v690
  %v692 = vpop.f32.mrb[0].mxu0
  %693 = vdwg.mxu0
  %695 = vset.pattern.permute.xlu0 0
  %696 = vperm.xlu0 %695, %v691
  %v697 = vpop.permute.xlu0 %696
  %700 = vrot.lane.b32.xlu0 %v618, 64
  %v701 = vpop.permute.xlu0 %700
  %v703 = vsel %vm169, %v701, 0.0
  %704 = vadd.xlane.f32.xlu0 %v703
  %v705 = vpop.xlane.xlu0 %704
  %706 = vmatprep.subr.mxu0 0.0
  %707 = vmatpush1.msra.mxu0 %v705
  %708 = vmatprep.subr.mxu0 0.0
  %709 = vmatpush1.msra.mxu0 0.0
  %710 = vmatprep.subr.mxu0 0.0
  %711 = vmatpush1.msra.mxu0 0.0
  %712 = vmatprep.subr.mxu0 0.0
  %713 = vmatpush1.msra.mxu0 0.0
  %714 = vmatprep.subr.mxu0 0.0
  %715 = vmatpush1.msra.mxu0 0.0
  %716 = vmatprep.subr.mxu0 0.0
  %717 = vmatpush1.msra.mxu0 0.0
  %718 = vmatprep.subr.mxu0 0.0
  %719 = vmatpush1.msra.mxu0 0.0
  %720 = vmatprep.subr.mxu0 0.0
  %721 = vmatpush1.msra.mxu0 0.0
  %722 = vmatprep.subr.mxu0 0.0
  %723 = vmatpush1.msra.mxu0 0.0
  %724 = vmatprep.subr.mxu0 0.0
  %725 = vmatpush1.msra.mxu0 0.0
  %726 = vmatprep.subr.mxu0 0.0
  %727 = vmatpush1.msra.mxu0 0.0
  %728 = vmatprep.subr.mxu0 0.0
  %729 = vmatpush1.msra.mxu0 0.0
  %730 = vmatprep.subr.mxu0 0.0
  %731 = vmatpush1.msra.mxu0 0.0
  %732 = vmatprep.subr.mxu0 0.0
  %733 = vmatpush1.msra.mxu0 0.0
  %734 = vmatprep.subr.mxu0 0.0
  %735 = vmatpush1.msra.mxu0 0.0
  %736 = vmatprep.subr.mxu0 0.0
  %737 = vmatpush1.msra.mxu0 0.0
  %738 = vmatprep.subr.mxu0 0.0
  %739 = vmatpush1.msra.mxu0 0.0
  %740 = vmatprep.subr.mxu0 0.0
  %741 = vmatpush1.msra.mxu0 0.0
  %742 = vmatprep.subr.mxu0 0.0
  %743 = vmatpush1.msra.mxu0 0.0
  %744 = vmatprep.subr.mxu0 0.0
  %745 = vmatpush1.msra.mxu0 0.0
  %746 = vmatprep.subr.mxu0 0.0
  %747 = vmatpush1.msra.mxu0 0.0
  %748 = vmatprep.subr.mxu0 0.0
  %749 = vmatpush1.msra.mxu0 0.0
  %750 = vmatprep.subr.mxu0 0.0
  %751 = vmatpush1.msra.mxu0 0.0
  %752 = vmatprep.subr.mxu0 0.0
  %753 = vmatpush1.msra.mxu0 0.0
  %754 = vmatprep.subr.mxu0 0.0
  %755 = vmatpush1.msra.mxu0 0.0
  %756 = vmatprep.subr.mxu0 0.0
  %757 = vmatpush1.msra.mxu0 0.0
  %758 = vmatprep.subr.mxu0 0.0
  %759 = vmatpush1.msra.mxu0 0.0
  %760 = vmatprep.subr.mxu0 0.0
  %761 = vmatpush1.msra.mxu0 0.0
  %762 = vmatprep.subr.mxu0 0.0
  %763 = vmatpush1.msra.mxu0 0.0
  %764 = vmatprep.subr.mxu0 0.0
  %765 = vmatpush1.msra.mxu0 0.0
  %766 = vmatprep.subr.mxu0 0.0
  %767 = vmatpush1.msra.mxu0 0.0
  %768 = vmatprep.subr.mxu0 0.0
  %769 = vmatpush1.msra.mxu0 0.0
  %770 = vmatprep.mubr.f32.mxu0 0.0
  %771 = vmatmul.mubr.f32.gmra.mrb[0].mxu0 %v176
  %v772 = vpop.f32.mrb[0].mxu0
  %v773 = vadd.f32 0.0, %v772
  %v774 = vpop.f32.mrb[0].mxu0
  %775 = vdwg.mxu0
  %777 = vset.pattern.permute.xlu0 0
  %778 = vperm.xlu0 %777, %v773
  %v779 = vpop.permute.xlu0 %778
  %v781 = vsel %vm169, %v697, %v779
  %v782 = vsub.f32 %v618, %v781
  %v783 = vmul.f32 %v782, %v782
  %v784 = vsel %vm169, %v783, 0.0
  %785 = vadd.xlane.f32.xlu0 %v784
  %v786 = vpop.xlane.xlu0 %785
  %787 = vmatprep.subr.mxu0 0.0
  %788 = vmatpush1.msra.mxu0 %v786
  %789 = vmatprep.subr.mxu0 0.0
  %790 = vmatpush1.msra.mxu0 0.0
  %791 = vmatprep.subr.mxu0 0.0
  %792 = vmatpush1.msra.mxu0 0.0
  %793 = vmatprep.subr.mxu0 0.0
  %794 = vmatpush1.msra.mxu0 0.0
  %795 = vmatprep.subr.mxu0 0.0
  %796 = vmatpush1.msra.mxu0 0.0
  %797 = vmatprep.subr.mxu0 0.0
  %798 = vmatpush1.msra.mxu0 0.0
  %799 = vmatprep.subr.mxu0 0.0
  %800 = vmatpush1.msra.mxu0 0.0
  %801 = vmatprep.subr.mxu0 0.0
  %802 = vmatpush1.msra.mxu0 0.0
  %803 = vmatprep.subr.mxu0 0.0
  %804 = vmatpush1.msra.mxu0 0.0
  %805 = vmatprep.subr.mxu0 0.0
  %806 = vmatpush1.msra.mxu0 0.0
  %807 = vmatprep.subr.mxu0 0.0
  %808 = vmatpush1.msra.mxu0 0.0
  %809 = vmatprep.subr.mxu0 0.0
  %810 = vmatpush1.msra.mxu0 0.0
  %811 = vmatprep.subr.mxu0 0.0
  %812 = vmatpush1.msra.mxu0 0.0
  %813 = vmatprep.subr.mxu0 0.0
  %814 = vmatpush1.msra.mxu0 0.0
  %815 = vmatprep.subr.mxu0 0.0
  %816 = vmatpush1.msra.mxu0 0.0
  %817 = vmatprep.subr.mxu0 0.0
  %818 = vmatpush1.msra.mxu0 0.0
  %819 = vmatprep.subr.mxu0 0.0
  %820 = vmatpush1.msra.mxu0 0.0
  %821 = vmatprep.subr.mxu0 0.0
  %822 = vmatpush1.msra.mxu0 0.0
  %823 = vmatprep.subr.mxu0 0.0
  %824 = vmatpush1.msra.mxu0 0.0
  %825 = vmatprep.subr.mxu0 0.0
  %826 = vmatpush1.msra.mxu0 0.0
  %827 = vmatprep.subr.mxu0 0.0
  %828 = vmatpush1.msra.mxu0 0.0
  %829 = vmatprep.subr.mxu0 0.0
  %830 = vmatpush1.msra.mxu0 0.0
  %831 = vmatprep.subr.mxu0 0.0
  %832 = vmatpush1.msra.mxu0 0.0
  %833 = vmatprep.subr.mxu0 0.0
  %834 = vmatpush1.msra.mxu0 0.0
  %835 = vmatprep.subr.mxu0 0.0
  %836 = vmatpush1.msra.mxu0 0.0
  %837 = vmatprep.subr.mxu0 0.0
  %838 = vmatpush1.msra.mxu0 0.0
  %839 = vmatprep.subr.mxu0 0.0
  %840 = vmatpush1.msra.mxu0 0.0
  %841 = vmatprep.subr.mxu0 0.0
  %842 = vmatpush1.msra.mxu0 0.0
  %843 = vmatprep.subr.mxu0 0.0
  %844 = vmatpush1.msra.mxu0 0.0
  %845 = vmatprep.subr.mxu0 0.0
  %846 = vmatpush1.msra.mxu0 0.0
  %847 = vmatprep.subr.mxu0 0.0
  %848 = vmatpush1.msra.mxu0 0.0
  %849 = vmatprep.subr.mxu0 0.0
  %850 = vmatpush1.msra.mxu0 0.0
  %851 = vmatprep.mubr.f32.mxu0 0.0
  %852 = vmatmul.mubr.f32.gmra.mrb[0].mxu0 %v176
  %v853 = vpop.f32.mrb[0].mxu0
  %v854 = vadd.f32 1e-05, %v853
  %v855 = vpop.f32.mrb[0].mxu0
  %856 = vdwg.mxu0
  %v857 = vrsqrt.pop %v854
  %859 = vset.pattern.permute.xlu0 0
  %860 = vperm.xlu0 %859, %v857
  %v861 = vpop.permute.xlu0 %860
  %864 = vrot.lane.b32.xlu0 %v783, 64
  %v865 = vpop.permute.xlu0 %864
  %v867 = vsel %vm169, %v865, 0.0
  %868 = vadd.xlane.f32.xlu0 %v867
  %v869 = vpop.xlane.xlu0 %868
  %870 = vmatprep.subr.mxu0 0.0
  %871 = vmatpush1.msra.mxu0 %v869
  %872 = vmatprep.subr.mxu0 0.0
  %873 = vmatpush1.msra.mxu0 0.0
  %874 = vmatprep.subr.mxu0 0.0
  %875 = vmatpush1.msra.mxu0 0.0
  %876 = vmatprep.subr.mxu0 0.0
  %877 = vmatpush1.msra.mxu0 0.0
  %878 = vmatprep.subr.mxu0 0.0
  %879 = vmatpush1.msra.mxu0 0.0
  %880 = vmatprep.subr.mxu0 0.0
  %881 = vmatpush1.msra.mxu0 0.0
  %882 = vmatprep.subr.mxu0 0.0
  %883 = vmatpush1.msra.mxu0 0.0
  %884 = vmatprep.subr.mxu0 0.0
  %885 = vmatpush1.msra.mxu0 0.0
  %886 = vmatprep.subr.mxu0 0.0
  %887 = vmatpush1.msra.mxu0 0.0
  %888 = vmatprep.subr.mxu0 0.0
  %889 = vmatpush1.msra.mxu0 0.0
  %890 = vmatprep.subr.mxu0 0.0
  %891 = vmatpush1.msra.mxu0 0.0
  %892 = vmatprep.subr.mxu0 0.0
  %893 = vmatpush1.msra.mxu0 0.0
  %894 = vmatprep.subr.mxu0 0.0
  %895 = vmatpush1.msra.mxu0 0.0
  %896 = vmatprep.subr.mxu0 0.0
  %897 = vmatpush1.msra.mxu0 0.0
  %898 = vmatprep.subr.mxu0 0.0
  %899 = vmatpush1.msra.mxu0 0.0
  %900 = vmatprep.subr.mxu0 0.0
  %901 = vmatpush1.msra.mxu0 0.0
  %902 = vmatprep.subr.mxu0 0.0
  %903 = vmatpush1.msra.mxu0 0.0
  %904 = vmatprep.subr.mxu0 0.0
  %905 = vmatpush1.msra.mxu0 0.0
  %906 = vmatprep.subr.mxu0 0.0
  %907 = vmatpush1.msra.mxu0 0.0
  %908 = vmatprep.subr.mxu0 0.0
  %909 = vmatpush1.msra.mxu0 0.0
  %910 = vmatprep.subr.mxu0 0.0
  %911 = vmatpush1.msra.mxu0 0.0
  %912 = vmatprep.subr.mxu0 0.0
  %913 = vmatpush1.msra.mxu0 0.0
  %914 = vmatprep.subr.mxu0 0.0
  %915 = vmatpush1.msra.mxu0 0.0
  %916 = vmatprep.subr.mxu0 0.0
  %917 = vmatpush1.msra.mxu0 0.0
  %918 = vmatprep.subr.mxu0 0.0
  %919 = vmatpush1.msra.mxu0 0.0
  %920 = vmatprep.subr.mxu0 0.0
  %921 = vmatpush1.msra.mxu0 0.0
  %922 = vmatprep.subr.mxu0 0.0
  %923 = vmatpush1.msra.mxu0 0.0
  %924 = vmatprep.subr.mxu0 0.0
  %925 = vmatpush1.msra.mxu0 0.0
  %926 = vmatprep.subr.mxu0 0.0
  %927 = vmatpush1.msra.mxu0 0.0
  %928 = vmatprep.subr.mxu0 0.0
  %929 = vmatpush1.msra.mxu0 0.0
  %930 = vmatprep.subr.mxu0 0.0
  %931 = vmatpush1.msra.mxu0 0.0
  %932 = vmatprep.subr.mxu0 0.0
  %933 = vmatpush1.msra.mxu0 0.0
  %934 = vmatprep.mubr.f32.mxu0 0.0
  %935 = vmatmul.mubr.f32.gmra.mrb[0].mxu0 %v176
  %v936 = vpop.f32.mrb[0].mxu0
  %v937 = vadd.f32 1e-05, %v936
  %v938 = vpop.f32.mrb[0].mxu0
  %939 = vdwg.mxu0
  %v940 = vrsqrt.pop %v937
  %942 = vset.pattern.permute.xlu0 0
  %943 = vperm.xlu0 %942, %v940
  %v944 = vpop.permute.xlu0 %943
  %v946 = vsel %vm169, %v861, %v944
  %v947 = vmul.f32 %v782, %v946
  %948 = vset.pattern.permute.xlu0 4
  %949 = vperm.xlu0 %948, %v23
  %v950 = vpop.permute.xlu0 %949
  %v952 = vmul.f32 %v947, %v950
  %953 = vset.pattern.permute.xlu0 5
  %954 = vperm.xlu0 %953, %v23
  %v955 = vpop.permute.xlu0 %954
  %v957 = vadd.f32 %v952, %v955
  %v958 = vxor.u32 %v957, 2147483648
  %v959 = vmul.f32 %v958, 1.442695
  %v960 = vpow.pop %v959
  %v961 = vadd.f32 %v960, 1.0
  %v962 = vrcp.pop %v961
  %v963 = vmul.f32 1.0, %v962
  %v964 = vmul.f32 %v957, %v963
  %965 = vrot.lane.b32.xlu0 %v964, 9
  %v966 = vpop.permute.xlu0 %965
  %v967 = vmul.f32 %v966, %v38
  %968 = vrot.lane.b32.xlu0 %v964, 8
  %v969 = vpop.permute.xlu0 %968
  %v970 = vmul.f32 %v969, %v45
  %971 = vrot.lane.b32.xlu0 %v964, 7
  %v972 = vpop.permute.xlu0 %971
  %v973 = vmul.f32 %v972, %v52
  %974 = vrot.lane.b32.xlu0 %v964, 1
  %v975 = vpop.permute.xlu0 %974
  %v976 = vmul.f32 %v975, %v59
  %977 = vrot.lane.b32.xlu0 %v964, 127
  %v978 = vpop.permute.xlu0 %977
  %v979 = vmul.f32 %v978, %v66
  %980 = vrot.lane.b32.xlu0 %v964, 121
  %v981 = vpop.permute.xlu0 %980
  %v982 = vmul.f32 %v981, %v73
  %983 = vrot.lane.b32.xlu0 %v964, 120
  %v984 = vpop.permute.xlu0 %983
  %v985 = vmul.f32 %v984, %v80
  %986 = vrot.lane.b32.xlu0 %v964, 119
  %v987 = vpop.permute.xlu0 %986
  %v988 = vmul.f32 %v987, %v87
  %989 = vmatprep.subr.mxu0 0.0
  %990 = vmatpush1.msra.mxu0 %v967
  %991 = vmatprep.subr.mxu0 0.0
  %992 = vmatpush1.msra.mxu0 %v970
  %993 = vmatprep.subr.mxu0 0.0
  %994 = vmatpush1.msra.mxu0 %v973
  %995 = vmatprep.subr.mxu0 0.0
  %996 = vmatpush1.msra.mxu0 %v976
  %997 = vmatprep.subr.mxu0 0.0
  %998 = vmatpush1.msra.mxu0 %v964
  %999 = vmatprep.subr.mxu0 0.0
  %1000 = vmatpush1.msra.mxu0 %v979
  %1001 = vmatprep.subr.mxu0 0.0
  %1002 = vmatpush1.msra.mxu0 %v982
  %1003 = vmatprep.subr.mxu0 0.0
  %1004 = vmatpush1.msra.mxu0 %v985
  %1005 = vmatprep.subr.mxu0 0.0
  %1006 = vmatpush1.msra.mxu0 %v988
  %1007 = vmatprep.subr.mxu0 0.0
  %1008 = vmatpush1.msra.mxu0 0.0
  %1009 = vmatprep.subr.mxu0 0.0
  %1010 = vmatpush1.msra.mxu0 0.0
  %1011 = vmatprep.subr.mxu0 0.0
  %1012 = vmatpush1.msra.mxu0 0.0
  %1013 = vmatprep.subr.mxu0 0.0
  %1014 = vmatpush1.msra.mxu0 0.0
  %1015 = vmatprep.subr.mxu0 0.0
  %1016 = vmatpush1.msra.mxu0 0.0
  %1017 = vmatprep.subr.mxu0 0.0
  %1018 = vmatpush1.msra.mxu0 0.0
  %1019 = vmatprep.subr.mxu0 0.0
  %1020 = vmatpush1.msra.mxu0 0.0
  %1021 = vmatprep.subr.mxu0 0.0
  %1022 = vmatpush1.msra.mxu0 0.0
  %1023 = vmatprep.subr.mxu0 0.0
  %1024 = vmatpush1.msra.mxu0 0.0
  %1025 = vmatprep.subr.mxu0 0.0
  %1026 = vmatpush1.msra.mxu0 0.0
  %1027 = vmatprep.subr.mxu0 0.0
  %1028 = vmatpush1.msra.mxu0 0.0
  %1029 = vmatprep.subr.mxu0 0.0
  %1030 = vmatpush1.msra.mxu0 0.0
  %1031 = vmatprep.subr.mxu0 0.0
  %1032 = vmatpush1.msra.mxu0 0.0
  %1033 = vmatprep.subr.mxu0 0.0
  %1034 = vmatpush1.msra.mxu0 0.0
  %1035 = vmatprep.subr.mxu0 0.0
  %1036 = vmatpush1.msra.mxu0 0.0
  %1037 = vmatprep.subr.mxu0 0.0
  %1038 = vmatpush1.msra.mxu0 0.0
  %1039 = vmatprep.subr.mxu0 0.0
  %1040 = vmatpush1.msra.mxu0 0.0
  %1041 = vmatprep.subr.mxu0 0.0
  %1042 = vmatpush1.msra.mxu0 0.0
  %1043 = vmatprep.subr.mxu0 0.0
  %1044 = vmatpush1.msra.mxu0 0.0
  %1045 = vmatprep.subr.mxu0 0.0
  %1046 = vmatpush1.msra.mxu0 0.0
  %1047 = vmatprep.subr.mxu0 0.0
  %1048 = vmatpush1.msra.mxu0 0.0
  %1049 = vmatprep.subr.mxu0 0.0
  %1050 = vmatpush1.msra.mxu0 0.0
  %1051 = vmatprep.subr.mxu0 0.0
  %1052 = vmatpush1.msra.mxu0 0.0
  %1053 = vmatprep.mubr.f32.mxu0 0.0
  %1054 = vmatmul.mubr.f32.gmra.mrb[0].mxu0 %v549
  %v1055 = vpop.f32.mrb[0].mxu0
  %v1056 = vadd.f32 %v546, %v1055
  %v1057 = vpop.f32.mrb[0].mxu0
  %1058 = vdwg.mxu0
  %v1059 = vsel %vm169, %v1056, 0.0
  %1060 = vadd.xlane.f32.xlu0 %v1059
  %v1061 = vpop.xlane.xlu0 %1060
  %1062 = vmatprep.subr.mxu0 0.0
  %1063 = vmatpush1.msra.mxu0 %v1061
  %1064 = vmatprep.subr.mxu0 0.0
  %1065 = vmatpush1.msra.mxu0 0.0
  %1066 = vmatprep.subr.mxu0 0.0
  %1067 = vmatpush1.msra.mxu0 0.0
  %1068 = vmatprep.subr.mxu0 0.0
  %1069 = vmatpush1.msra.mxu0 0.0
  %1070 = vmatprep.subr.mxu0 0.0
  %1071 = vmatpush1.msra.mxu0 0.0
  %1072 = vmatprep.subr.mxu0 0.0
  %1073 = vmatpush1.msra.mxu0 0.0
  %1074 = vmatprep.subr.mxu0 0.0
  %1075 = vmatpush1.msra.mxu0 0.0
  %1076 = vmatprep.subr.mxu0 0.0
  %1077 = vmatpush1.msra.mxu0 0.0
  %1078 = vmatprep.subr.mxu0 0.0
  %1079 = vmatpush1.msra.mxu0 0.0
  %1080 = vmatprep.subr.mxu0 0.0
  %1081 = vmatpush1.msra.mxu0 0.0
  %1082 = vmatprep.subr.mxu0 0.0
  %1083 = vmatpush1.msra.mxu0 0.0
  %1084 = vmatprep.subr.mxu0 0.0
  %1085 = vmatpush1.msra.mxu0 0.0
  %1086 = vmatprep.subr.mxu0 0.0
  %1087 = vmatpush1.msra.mxu0 0.0
  %1088 = vmatprep.subr.mxu0 0.0
  %1089 = vmatpush1.msra.mxu0 0.0
  %1090 = vmatprep.subr.mxu0 0.0
  %1091 = vmatpush1.msra.mxu0 0.0
  %1092 = vmatprep.subr.mxu0 0.0
  %1093 = vmatpush1.msra.mxu0 0.0
  %1094 = vmatprep.subr.mxu0 0.0
  %1095 = vmatpush1.msra.mxu0 0.0
  %1096 = vmatprep.subr.mxu0 0.0
  %1097 = vmatpush1.msra.mxu0 0.0
  %1098 = vmatprep.subr.mxu0 0.0
  %1099 = vmatpush1.msra.mxu0 0.0
  %1100 = vmatprep.subr.mxu0 0.0
  %1101 = vmatpush1.msra.mxu0 0.0
  %1102 = vmatprep.subr.mxu0 0.0
  %1103 = vmatpush1.msra.mxu0 0.0
  %1104 = vmatprep.subr.mxu0 0.0
  %1105 = vmatpush1.msra.mxu0 0.0
  %1106 = vmatprep.subr.mxu0 0.0
  %1107 = vmatpush1.msra.mxu0 0.0
  %1108 = vmatprep.subr.mxu0 0.0
  %1109 = vmatpush1.msra.mxu0 0.0
  %1110 = vmatprep.subr.mxu0 0.0
  %1111 = vmatpush1.msra.mxu0 0.0
  %1112 = vmatprep.subr.mxu0 0.0
  %1113 = vmatpush1.msra.mxu0 0.0
  %1114 = vmatprep.subr.mxu0 0.0
  %1115 = vmatpush1.msra.mxu0 0.0
  %1116 = vmatprep.subr.mxu0 0.0
  %1117 = vmatpush1.msra.mxu0 0.0
  %1118 = vmatprep.subr.mxu0 0.0
  %1119 = vmatpush1.msra.mxu0 0.0
  %1120 = vmatprep.subr.mxu0 0.0
  %1121 = vmatpush1.msra.mxu0 0.0
  %1122 = vmatprep.subr.mxu0 0.0
  %1123 = vmatpush1.msra.mxu0 0.0
  %1124 = vmatprep.subr.mxu0 0.0
  %1125 = vmatpush1.msra.mxu0 0.0
  %1126 = vmatprep.mubr.f32.mxu0 0.0
  %1127 = vmatmul.mubr.f32.gmra.mrb[0].mxu0 %v176
  %v1128 = vpop.f32.mrb[0].mxu0
  %v1129 = vadd.f32 0.0, %v1128
  %v1130 = vpop.f32.mrb[0].mxu0
  %1131 = vdwg.mxu0
  %1133 = vset.pattern.permute.xlu0 0
  %1134 = vperm.xlu0 %1133, %v1129
  %v1135 = vpop.permute.xlu0 %1134
  %1138 = vrot.lane.b32.xlu0 %v1056, 64
  %v1139 = vpop.permute.xlu0 %1138
  %v1141 = vsel %vm169, %v1139, 0.0
  %1142 = vadd.xlane.f32.xlu0 %v1141
  %v1143 = vpop.xlane.xlu0 %1142
  %1144 = vmatprep.subr.mxu0 0.0
  %1145 = vmatpush1.msra.mxu0 %v1143
  %1146 = vmatprep.subr.mxu0 0.0
  %1147 = vmatpush1.msra.mxu0 0.0
  %1148 = vmatprep.subr.mxu0 0.0
  %1149 = vmatpush1.msra.mxu0 0.0
  %1150 = vmatprep.subr.mxu0 0.0
  %1151 = vmatpush1.msra.mxu0 0.0
  %1152 = vmatprep.subr.mxu0 0.0
  %1153 = vmatpush1.msra.mxu0 0.0
  %1154 = vmatprep.subr.mxu0 0.0
  %1155 = vmatpush1.msra.mxu0 0.0
  %1156 = vmatprep.subr.mxu0 0.0
  %1157 = vmatpush1.msra.mxu0 0.0
  %1158 = vmatprep.subr.mxu0 0.0
  %1159 = vmatpush1.msra.mxu0 0.0
  %1160 = vmatprep.subr.mxu0 0.0
  %1161 = vmatpush1.msra.mxu0 0.0
  %1162 = vmatprep.subr.mxu0 0.0
  %1163 = vmatpush1.msra.mxu0 0.0
  %1164 = vmatprep.subr.mxu0 0.0
  %1165 = vmatpush1.msra.mxu0 0.0
  %1166 = vmatprep.subr.mxu0 0.0
  %1167 = vmatpush1.msra.mxu0 0.0
  %1168 = vmatprep.subr.mxu0 0.0
  %1169 = vmatpush1.msra.mxu0 0.0
  %1170 = vmatprep.subr.mxu0 0.0
  %1171 = vmatpush1.msra.mxu0 0.0
  %1172 = vmatprep.subr.mxu0 0.0
  %1173 = vmatpush1.msra.mxu0 0.0
  %1174 = vmatprep.subr.mxu0 0.0
  %1175 = vmatpush1.msra.mxu0 0.0
  %1176 = vmatprep.subr.mxu0 0.0
  %1177 = vmatpush1.msra.mxu0 0.0
  %1178 = vmatprep.subr.mxu0 0.0
  %1179 = vmatpush1.msra.mxu0 0.0
  %1180 = vmatprep.subr.mxu0 0.0
  %1181 = vmatpush1.msra.mxu0 0.0
  %1182 = vmatprep.subr.mxu0 0.0
  %1183 = vmatpush1.msra.mxu0 0.0
  %1184 = vmatprep.subr.mxu0 0.0
  %1185 = vmatpush1.msra.mxu0 0.0
  %1186 = vmatprep.subr.mxu0 0.0
  %1187 = vmatpush1.msra.mxu0 0.0
  %1188 = vmatprep.subr.mxu0 0.0
  %1189 = vmatpush1.msra.mxu0 0.0
  %1190 = vmatprep.subr.mxu0 0.0
  %1191 = vmatpush1.msra.mxu0 0.0
  %1192 = vmatprep.subr.mxu0 0.0
  %1193 = vmatpush1.msra.mxu0 0.0
  %1194 = vmatprep.subr.mxu0 0.0
  %1195 = vmatpush1.msra.mxu0 0.0
  %1196 = vmatprep.subr.mxu0 0.0
  %1197 = vmatpush1.msra.mxu0 0.0
  %1198 = vmatprep.subr.mxu0 0.0
  %1199 = vmatpush1.msra.mxu0 0.0
  %1200 = vmatprep.subr.mxu0 0.0
  %1201 = vmatpush1.msra.mxu0 0.0
  %1202 = vmatprep.subr.mxu0 0.0
  %1203 = vmatpush1.msra.mxu0 0.0
  %1204 = vmatprep.subr.mxu0 0.0
  %1205 = vmatpush1.msra.mxu0 0.0
  %1206 = vmatprep.subr.mxu0 0.0
  %1207 = vmatpush1.msra.mxu0 0.0
  %1208 = vmatprep.mubr.f32.mxu0 0.0
  %1209 = vmatmul.mubr.f32.gmra.mrb[0].mxu0 %v176
  %v1210 = vpop.f32.mrb[0].mxu0
  %v1211 = vadd.f32 0.0, %v1210
  %v1212 = vpop.f32.mrb[0].mxu0
  %1213 = vdwg.mxu0
  %1215 = vset.pattern.permute.xlu0 0
  %1216 = vperm.xlu0 %1215, %v1211
  %v1217 = vpop.permute.xlu0 %1216
  %v1219 = vsel %vm169, %v1135, %v1217
  %v1220 = vsub.f32 %v1056, %v1219
  %v1221 = vmul.f32 %v1220, %v1220
  %v1222 = vsel %vm169, %v1221, 0.0
  %1223 = vadd.xlane.f32.xlu0 %v1222
  %v1224 = vpop.xlane.xlu0 %1223
  %1225 = vmatprep.subr.mxu0 0.0
  %1226 = vmatpush1.msra.mxu0 %v1224
  %1227 = vmatprep.subr.mxu0 0.0
  %1228 = vmatpush1.msra.mxu0 0.0
  %1229 = vmatprep.subr.mxu0 0.0
  %1230 = vmatpush1.msra.mxu0 0.0
  %1231 = vmatprep.subr.mxu0 0.0
  %1232 = vmatpush1.msra.mxu0 0.0
  %1233 = vmatprep.subr.mxu0 0.0
  %1234 = vmatpush1.msra.mxu0 0.0
  %1235 = vmatprep.subr.mxu0 0.0
  %1236 = vmatpush1.msra.mxu0 0.0
  %1237 = vmatprep.subr.mxu0 0.0
  %1238 = vmatpush1.msra.mxu0 0.0
  %1239 = vmatprep.subr.mxu0 0.0
  %1240 = vmatpush1.msra.mxu0 0.0
  %1241 = vmatprep.subr.mxu0 0.0
  %1242 = vmatpush1.msra.mxu0 0.0
  %1243 = vmatprep.subr.mxu0 0.0
  %1244 = vmatpush1.msra.mxu0 0.0
  %1245 = vmatprep.subr.mxu0 0.0
  %1246 = vmatpush1.msra.mxu0 0.0
  %1247 = vmatprep.subr.mxu0 0.0
  %1248 = vmatpush1.msra.mxu0 0.0
  %1249 = vmatprep.subr.mxu0 0.0
  %1250 = vmatpush1.msra.mxu0 0.0
  %1251 = vmatprep.subr.mxu0 0.0
  %1252 = vmatpush1.msra.mxu0 0.0
  %1253 = vmatprep.subr.mxu0 0.0
  %1254 = vmatpush1.msra.mxu0 0.0
  %1255 = vmatprep.subr.mxu0 0.0
  %1256 = vmatpush1.msra.mxu0 0.0
  %1257 = vmatprep.subr.mxu0 0.0
  %1258 = vmatpush1.msra.mxu0 0.0
  %1259 = vmatprep.subr.mxu0 0.0
  %1260 = vmatpush1.msra.mxu0 0.0
  %1261 = vmatprep.subr.mxu0 0.0
  %1262 = vmatpush1.msra.mxu0 0.0
  %1263 = vmatprep.subr.mxu0 0.0
  %1264 = vmatpush1.msra.mxu0 0.0
  %1265 = vmatprep.subr.mxu0 0.0
  %1266 = vmatpush1.msra.mxu0 0.0
  %1267 = vmatprep.subr.mxu0 0.0
  %1268 = vmatpush1.msra.mxu0 0.0
  %1269 = vmatprep.subr.mxu0 0.0
  %1270 = vmatpush1.msra.mxu0 0.0
  %1271 = vmatprep.subr.mxu0 0.0
  %1272 = vmatpush1.msra.mxu0 0.0
  %1273 = vmatprep.subr.mxu0 0.0
  %1274 = vmatpush1.msra.mxu0 0.0
  %1275 = vmatprep.subr.mxu0 0.0
  %1276 = vmatpush1.msra.mxu0 0.0
  %1277 = vmatprep.subr.mxu0 0.0
  %1278 = vmatpush1.msra.mxu0 0.0
  %1279 = vmatprep.subr.mxu0 0.0
  %1280 = vmatpush1.msra.mxu0 0.0
  %1281 = vmatprep.subr.mxu0 0.0
  %1282 = vmatpush1.msra.mxu0 0.0
  %1283 = vmatprep.subr.mxu0 0.0
  %1284 = vmatpush1.msra.mxu0 0.0
  %1285 = vmatprep.subr.mxu0 0.0
  %1286 = vmatpush1.msra.mxu0 0.0
  %1287 = vmatprep.subr.mxu0 0.0
  %1288 = vmatpush1.msra.mxu0 0.0
  %1289 = vmatprep.mubr.f32.mxu0 0.0
  %1290 = vmatmul.mubr.f32.gmra.mrb[0].mxu0 %v176
  %v1291 = vpop.f32.mrb[0].mxu0
  %v1292 = vadd.f32 1e-05, %v1291
  %v1293 = vpop.f32.mrb[0].mxu0
  %1294 = vdwg.mxu0
  %v1295 = vrsqrt.pop %v1292
  %1297 = vset.pattern.permute.xlu0 0
  %1298 = vperm.xlu0 %1297, %v1295
  %v1299 = vpop.permute.xlu0 %1298
  %1302 = vrot.lane.b32.xlu0 %v1221, 64
  %v1303 = vpop.permute.xlu0 %1302
  %v1305 = vsel %vm169, %v1303, 0.0
  %1306 = vadd.xlane.f32.xlu0 %v1305
  %v1307 = vpop.xlane.xlu0 %1306
  %1308 = vmatprep.subr.mxu0 0.0
  %1309 = vmatpush1.msra.mxu0 %v1307
  %1310 = vmatprep.subr.mxu0 0.0
  %1311 = vmatpush1.msra.mxu0 0.0
  %1312 = vmatprep.subr.mxu0 0.0
  %1313 = vmatpush1.msra.mxu0 0.0
  %1314 = vmatprep.subr.mxu0 0.0
  %1315 = vmatpush1.msra.mxu0 0.0
  %1316 = vmatprep.subr.mxu0 0.0
  %1317 = vmatpush1.msra.mxu0 0.0
  %1318 = vmatprep.subr.mxu0 0.0
  %1319 = vmatpush1.msra.mxu0 0.0
  %1320 = vmatprep.subr.mxu0 0.0
  %1321 = vmatpush1.msra.mxu0 0.0
  %1322 = vmatprep.subr.mxu0 0.0
  %1323 = vmatpush1.msra.mxu0 0.0
  %1324 = vmatprep.subr.mxu0 0.0
  %1325 = vmatpush1.msra.mxu0 0.0
  %1326 = vmatprep.subr.mxu0 0.0
  %1327 = vmatpush1.msra.mxu0 0.0
  %1328 = vmatprep.subr.mxu0 0.0
  %1329 = vmatpush1.msra.mxu0 0.0
  %1330 = vmatprep.subr.mxu0 0.0
  %1331 = vmatpush1.msra.mxu0 0.0
  %1332 = vmatprep.subr.mxu0 0.0
  %1333 = vmatpush1.msra.mxu0 0.0
  %1334 = vmatprep.subr.mxu0 0.0
  %1335 = vmatpush1.msra.mxu0 0.0
  %1336 = vmatprep.subr.mxu0 0.0
  %1337 = vmatpush1.msra.mxu0 0.0
  %1338 = vmatprep.subr.mxu0 0.0
  %1339 = vmatpush1.msra.mxu0 0.0
  %1340 = vmatprep.subr.mxu0 0.0
  %1341 = vmatpush1.msra.mxu0 0.0
  %1342 = vmatprep.subr.mxu0 0.0
  %1343 = vmatpush1.msra.mxu0 0.0
  %1344 = vmatprep.subr.mxu0 0.0
  %1345 = vmatpush1.msra.mxu0 0.0
  %1346 = vmatprep.subr.mxu0 0.0
  %1347 = vmatpush1.msra.mxu0 0.0
  %1348 = vmatprep.subr.mxu0 0.0
  %1349 = vmatpush1.msra.mxu0 0.0
  %1350 = vmatprep.subr.mxu0 0.0
  %1351 = vmatpush1.msra.mxu0 0.0
  %1352 = vmatprep.subr.mxu0 0.0
  %1353 = vmatpush1.msra.mxu0 0.0
  %1354 = vmatprep.subr.mxu0 0.0
  %1355 = vmatpush1.msra.mxu0 0.0
  %1356 = vmatprep.subr.mxu0 0.0
  %1357 = vmatpush1.msra.mxu0 0.0
  %1358 = vmatprep.subr.mxu0 0.0
  %1359 = vmatpush1.msra.mxu0 0.0
  %1360 = vmatprep.subr.mxu0 0.0
  %1361 = vmatpush1.msra.mxu0 0.0
  %1362 = vmatprep.subr.mxu0 0.0
  %1363 = vmatpush1.msra.mxu0 0.0
  %1364 = vmatprep.subr.mxu0 0.0
  %1365 = vmatpush1.msra.mxu0 0.0
  %1366 = vmatprep.subr.mxu0 0.0
  %1367 = vmatpush1.msra.mxu0 0.0
  %1368 = vmatprep.subr.mxu0 0.0
  %1369 = vmatpush1.msra.mxu0 0.0
  %1370 = vmatprep.subr.mxu0 0.0
  %1371 = vmatpush1.msra.mxu0 0.0
  %1372 = vmatprep.mubr.f32.mxu0 0.0
  %1373 = vmatmul.mubr.f32.gmra.mrb[0].mxu0 %v176
  %v1374 = vpop.f32.mrb[0].mxu0
  %v1375 = vadd.f32 1e-05, %v1374
  %v1376 = vpop.f32.mrb[0].mxu0
  %1377 = vdwg.mxu0
  %v1378 = vrsqrt.pop %v1375
  %1380 = vset.pattern.permute.xlu0 0
  %1381 = vperm.xlu0 %1380, %v1378
  %v1382 = vpop.permute.xlu0 %1381
  %v1384 = vsel %vm169, %v1299, %v1382
  %v1385 = vmul.f32 %v1220, %v1384
  %v1386 = vmul.f32 %v1385, %v950
  %v1387 = vadd.f32 %v1386, %v955
  %v1388 = vxor.u32 %v1387, 2147483648
  %v1389 = vmul.f32 %v1388, 1.442695
  %v1390 = vpow.pop %v1389
  %v1391 = vadd.f32 %v1390, 1.0
  %v1392 = vrcp.pop %v1391
  %v1393 = vmul.f32 1.0, %v1392
  %v1394 = vmul.f32 %v1387, %v1393
  %v1395 = vld [vmem:[%s1] sm:$0xff]
  %v1396 = vadd.f32 %v1394, %v1395
  %1397 = vst [vmem:[%s6] sm:$0xff] %v1396
  // Predicated region
  $region26: #{down_forward.1} parent=0 // pred_check
    _
  $region27: #{down_forward.1} parent=0 // pred_check_branch
    %1399 = sbr.rel (0) target = $region29
  $region28: #{down_forward.1} parent=0 // pred_region
    _
  $region29: #{down_forward.1} parent=0 // pred_fallthru
    _
  // Predicated region
  $region30: #{down_forward.1} parent=0 // pred_check
    _
  $region31: #{down_forward.1} parent=0 // pred_check_branch
    %1401 = sbr.rel (0) target = $region33
  $region32: #{down_forward.1} parent=0 // pred_region
    _
  $region33: #{down_forward.1} parent=0 // pred_fallthru
    _

</llo_original>
